<compile_context>
chip_gen: v7x
topology: tpu7x:2x2x1
jax: 0.10.0
libtpu: 0.0.40
codegen_flags: <defaults>
</compile_context>

<pallas_src>
import jax
import jax.numpy as jnp
from jax.experimental import pallas as pl
from jax.experimental.pallas import tpu as pltpu


def _critic_kernel(z_ref, w1_ref, b1_ref, w2_ref, b2_ref, w3_ref, b3_ref,
                   o_ref):
    """One batch tile. With Fp = padded S+A, H = hidden, T = TILE_B:
       z  (Fp, T) bf16 | w1 (H, Fp) bf16 | b1 (H, 1) f32
       w2 (H, H)  bf16 | b2 (H, 1)  f32  | w3 (1, H) bf16 | b3 (1,1) f32 SMEM
       o  (1, T)  f32  (lane-dense Q row)
    """
    # Layer 1: ReLU(W1 @ z + b1) -> (H, T), f32 accumulate on the MXU.
    h1 = jnp.dot(w1_ref[...], z_ref[...],
                 preferred_element_type=jnp.float32) + b1_ref[...]
    h1 = jnp.maximum(h1, 0.0)

    # Layer 2: ReLU(W2 @ h1 + b2) -> (H, T)
    h2 = jnp.dot(w2_ref[...], h1.astype(w2_ref.dtype),
                 preferred_element_type=jnp.float32) + b2_ref[...]
    h2 = jnp.maximum(h2, 0.0)

    # Layer 3: W3 @ h2 + b3 -> (1, T), batch on the lane axis.
    q = jnp.dot(w3_ref[...], h2.astype(w3_ref.dtype),
                preferred_element_type=jnp.float32) + b3_ref[0, 0]
    o_ref[...] = q.astype(o_ref.dtype)


def _round_up(n, m):
    return ((n + m - 1) // m) * m


def _resident_spec(block_shape):
    """Constant-index (VMEM-resident) spec; single-buffered when supported."""
    index_map = lambda i: (0,) * len(block_shape)
    buffered = getattr(pl, "Buffered", None)
    if buffered is not None:
        try:
            return pl.BlockSpec(block_shape, index_map,
                                pipeline_mode=buffered(1))
        except TypeError:
            pass  # older API without pipeline_mode: fall back to default.
    return pl.BlockSpec(block_shape, index_map)


def _vmem_bytes_estimate(f_pad, h, tile_b):
    """Rough per-core VMEM footprint for one tile (bytes)."""
    act_in = 2 * f_pad * tile_b * 2            # double-buffered bf16 z slab
    act_out = 2 * 8 * tile_b * 4               # double-buffered (1->8, T) f32 out
    weights = (h * f_pad + h * h + 8 * h) * 2  # bf16 resident weights
    biases = 2 * h * 128 * 4                   # lane-padded (H,1) f32 biases
    inter = 2 * h * tile_b * 4 + 2 * h * tile_b * 2  # h1/h2 f32 + bf16 casts
    return act_in + act_out + weights + biases + inter


def critic_forward(x, u, params, *, tile_b=2048):
    """x: (B, S), u: (B, A) -> Q: (B, 1) float32."""
    B, S = x.shape
    A = u.shape[1]
    w1, b1, w2, b2, w3, b3 = params          # PyTorch layout: (out, in)
    H = w1.shape[0]
    F = S + A
    assert w1.shape == (H, F) and w2.shape == (H, H) and w3.shape == (1, H)

    # --- batch tiling -------------------------------------------------------
    b128 = _round_up(B, 128)                       # minimal lane-aligned batch
    tile_b = max(128, (min(int(tile_b), b128) // 128) * 128)
    if b128 >= 256:
        # Keep at least 2 balanced grid steps so the "parallel" batch axis can
        # be split across both TensorCores on v7x (one mega-tile idles a TC).
        tile_b = min(tile_b, max(128, (b128 // 2 // 128) * 128))
    padded_b = _round_up(B, tile_b)
    n_tiles = padded_b // tile_b

    # --- operand prep (cast before pad/transpose: halves wrapper HBM bytes) --
    F_pad = _round_up(F, 16)                       # bf16 sublane-pack alignment
    z = jnp.concatenate([x.astype(jnp.bfloat16), u.astype(jnp.bfloat16)],
                        axis=-1)                   # (B, F) bf16
    if padded_b != B or F_pad != F:
        z = jnp.pad(z, ((0, padded_b - B), (0, F_pad - F)))
    z_t = z.T                                      # (F_pad, padded_b), batch on lanes

    w1_bf = w1.astype(jnp.bfloat16)
    if F_pad != F:
        w1_bf = jnp.pad(w1_bf, ((0, 0), (0, F_pad - F)))
    w2_bf = w2.astype(jnp.bfloat16)
    w3_bf = w3.astype(jnp.bfloat16)
    b1_col = b1.reshape(H, 1).astype(jnp.float32)
    b2_col = b2.reshape(H, 1).astype(jnp.float32)
    b3_s = b3.reshape(1, 1).astype(jnp.float32)

    # --- compiler hints ------------------------------------------------------
    vmem_limit = int(min(48 * 1024 * 1024,
                         max(32 * 1024 * 1024,
                             2 * _vmem_bytes_estimate(F_pad, H, tile_b))))
    flops = 2 * B * (H * F + H * H + H)
    bytes_accessed = (padded_b * F_pad * 2
                      + (H * F_pad + H * H + H) * 2
                      + (2 * H + 1) * 4
                      + padded_b * 4)
    cost = pl.CostEstimate(flops=int(flops), transcendentals=0,
                           bytes_accessed=int(bytes_accessed))

    grid_spec = pltpu.PrefetchScalarGridSpec(
        num_scalar_prefetch=0,
        grid=(n_tiles,),
        in_specs=[
            # Activations: one (F_pad, TILE_B) slab per grid step (pipelined).
            pl.BlockSpec((F_pad, tile_b), lambda i: (0, i)),
            # Weights / biases: constant index_map -> loaded once, resident,
            # single-buffered (no wasted second buffer).
            _resident_spec((H, F_pad)),
            _resident_spec((H, 1)),
            _resident_spec((H, H)),
            _resident_spec((H, 1)),
            _resident_spec((1, H)),
            # b3 is a single scalar -> SMEM, no VMEM tile wasted.
            pl.BlockSpec(memory_space=pltpu.MemorySpace.SMEM),
        ],
        out_specs=pl.BlockSpec((1, tile_b), lambda i: (0, i)),
    )

    q_row = pl.pallas_call(
        _critic_kernel,
        out_shape=jax.ShapeDtypeStruct((1, padded_b), jnp.float32),
        grid_spec=grid_spec,
        compiler_params=pltpu.CompilerParams(
            dimension_semantics=("parallel",),
            vmem_limit_bytes=vmem_limit),
        cost_estimate=cost,
    )(z_t, w1_bf, b1_col, w2_bf, b2_col, w3_bf, b3_s)

    return q_row[0, :B].reshape(B, 1)


def init_critic_params(key, state_dim, act_dim, hidden_dim=256):
    """PyTorch-style init (uniform +/- 1/sqrt(fan_in)), PyTorch (out, in) layout."""
    in1 = state_dim + act_dim
    ks = jax.random.split(key, 6)

    def unif(k, shape, fan_in):
        bound = 1.0 / jnp.sqrt(jnp.float32(fan_in))
        return jax.random.uniform(k, shape, jnp.float32, -bound, bound)

    w1 = unif(ks[0], (hidden_dim, in1), in1)
    b1 = unif(ks[1], (hidden_dim,), in1)
    w2 = unif(ks[2], (hidden_dim, hidden_dim), hidden_dim)
    b2 = unif(ks[3], (hidden_dim,), hidden_dim)
    w3 = unif(ks[4], (1, hidden_dim), hidden_dim)
    b3 = unif(ks[5], (1,), hidden_dim)
    return (w1, b1, w2, b2, w3, b3)


def critic_reference(x, u, params):
    """Plain-JAX f32 reference (matches the PyTorch module)."""
    w1, b1, w2, b2, w3, b3 = params
    z = jnp.concatenate([x, u], axis=-1)
    h1 = jnp.maximum(z @ w1.T + b1, 0.0)
    h2 = jnp.maximum(h1 @ w2.T + b2, 0.0)
    return h2 @ w3.T + b3


if __name__ == "__main__":
    key = jax.random.PRNGKey(0)
    k_p, k_x, k_u = jax.random.split(key, 3)

    # Small-but-tiled shapes: padded batch 384 -> 3 grid steps of 128,
    # exercising the >=2-tiles (dual-TC) path and last-tile padding slice.
    B, S, A, H = 384, 8, 4, 256
    params = init_critic_params(k_p, S, A, H)
    x = jax.random.normal(k_x, (B, S), jnp.float32)
    u = jax.random.normal(k_u, (B, A), jnp.float32)

    q = critic_forward(x, u, params)
    jax.block_until_ready(q)

    q_ref = critic_reference(x, u, params)
    assert q.shape == (B, 1)
    # bf16 MXU inputs with f32 accumulation -> loosened tolerance vs f32 ref.
    assert jnp.allclose(q, q_ref, atol=3e-2, rtol=3e-2), (
        float(jnp.max(jnp.abs(q - q_ref))))

    print("KERNEL_OK")
</pallas_src>

<mosaic_0001>
module attributes {stable_mosaic.version = 11 : i64} {
  func.func @_critic_kernel(%arg0: i32, %arg1: memref<16x128xbf16, #tpu.memory_space<vmem>>, %arg2: memref<256x16xbf16, #tpu.memory_space<vmem>>, %arg3: memref<256x1xf32, #tpu.memory_space<vmem>>, %arg4: memref<256x256xbf16, #tpu.memory_space<vmem>>, %arg5: memref<256x1xf32, #tpu.memory_space<vmem>>, %arg6: memref<1x256xbf16, #tpu.memory_space<vmem>>, %arg7: memref<1x1xf32, #tpu.memory_space<smem>>, %arg8: memref<1x128xf32, #tpu.memory_space<vmem>>) attributes {dimension_semantics = [#tpu.dimension_semantics<parallel>], iteration_bounds = array<i64: 3>, scalar_prefetch = 0 : i64, scratch_operands = 0 : i64, tpu.core_type = #tpu.core_type<tc>, window_params = [{transform_indices = @transform_0, window_bounds = array<i64: 16, 128>}, {pipeline_mode = #tpu.pipeline_mode<synchronous>, transform_indices = @transform_1, window_bounds = array<i64: 256, 16>}, {pipeline_mode = #tpu.pipeline_mode<synchronous>, transform_indices = @transform_2, window_bounds = array<i64: 256, 1>}, {pipeline_mode = #tpu.pipeline_mode<synchronous>, transform_indices = @transform_3, window_bounds = array<i64: 256, 256>}, {pipeline_mode = #tpu.pipeline_mode<synchronous>, transform_indices = @transform_4, window_bounds = array<i64: 256, 1>}, {pipeline_mode = #tpu.pipeline_mode<synchronous>, transform_indices = @transform_5, window_bounds = array<i64: 1, 256>}, {transform_indices = @transform_6, window_bounds = array<i64: 1, 1>}, {transform_indices = @transform_7, window_bounds = array<i64: 1, 128>}]} {
    %c0 = arith.constant 0 : index
    %c0_0 = arith.constant 0 : index
    %0 = vector.load %arg2[%c0, %c0_0] : memref<256x16xbf16, #tpu.memory_space<vmem>>, vector<256x16xbf16>
    %c0_1 = arith.constant 0 : index
    %c0_2 = arith.constant 0 : index
    %1 = vector.load %arg1[%c0_1, %c0_2] : memref<16x128xbf16, #tpu.memory_space<vmem>>, vector<16x128xbf16>
    %cst = arith.constant dense<0.000000e+00> : vector<256x128xf32>
    %2 = tpu.matmul %0, %1, %cst {dimension_numbers = #tpu.dot_dimension_numbers<[1], [0], [0], [1], [0, 0, 1, 1], [], []>} : vector<256x16xbf16>, vector<16x128xbf16>, vector<256x128xf32> -> vector<256x128xf32>
    %c0_3 = arith.constant 0 : index
    %c0_4 = arith.constant 0 : index
    %3 = vector.load %arg3[%c0_3, %c0_4] : memref<256x1xf32, #tpu.memory_space<vmem>>, vector<256x1xf32>
    %4 = vector.broadcast %3 : vector<256x1xf32> to vector<256x128xf32>
    %5 = arith.addf %2, %4 : vector<256x128xf32>
    %cst_5 = arith.constant 0.000000e+00 : f32
    %6 = vector.broadcast %cst_5 : f32 to vector<256x128xf32>
    %7 = arith.maximumf %5, %6 : vector<256x128xf32>
    %c0_6 = arith.constant 0 : index
    %c0_7 = arith.constant 0 : index
    %8 = vector.load %arg4[%c0_6, %c0_7] : memref<256x256xbf16, #tpu.memory_space<vmem>>, vector<256x256xbf16>
    %9 = arith.truncf %7 : vector<256x128xf32> to vector<256x128xbf16>
    %cst_8 = arith.constant dense<0.000000e+00> : vector<256x128xf32>
    %10 = tpu.matmul %8, %9, %cst_8 {dimension_numbers = #tpu.dot_dimension_numbers<[1], [0], [0], [1], [0, 0, 1, 1], [], []>} : vector<256x256xbf16>, vector<256x128xbf16>, vector<256x128xf32> -> vector<256x128xf32>
    %c0_9 = arith.constant 0 : index
    %c0_10 = arith.constant 0 : index
    %11 = vector.load %arg5[%c0_9, %c0_10] : memref<256x1xf32, #tpu.memory_space<vmem>>, vector<256x1xf32>
    %12 = vector.broadcast %11 : vector<256x1xf32> to vector<256x128xf32>
    %13 = arith.addf %10, %12 : vector<256x128xf32>
    %cst_11 = arith.constant 0.000000e+00 : f32
    %14 = vector.broadcast %cst_11 : f32 to vector<256x128xf32>
    %15 = arith.maximumf %13, %14 : vector<256x128xf32>
    %c0_12 = arith.constant 0 : index
    %c0_13 = arith.constant 0 : index
    %16 = vector.load %arg6[%c0_12, %c0_13] : memref<1x256xbf16, #tpu.memory_space<vmem>>, vector<1x256xbf16>
    %17 = arith.truncf %15 : vector<256x128xf32> to vector<256x128xbf16>
    %cst_14 = arith.constant dense<0.000000e+00> : vector<1x128xf32>
    %18 = tpu.matmul %16, %17, %cst_14 {dimension_numbers = #tpu.dot_dimension_numbers<[1], [0], [0], [1], [0, 0, 1, 1], [], []>} : vector<1x256xbf16>, vector<256x128xbf16>, vector<1x128xf32> -> vector<1x128xf32>
    %c0_15 = arith.constant 0 : index
    %c0_16 = arith.constant 0 : index
    %19 = memref.load %arg7[%c0_15, %c0_16] : memref<1x1xf32, #tpu.memory_space<smem>>
    %20 = vector.broadcast %19 : f32 to vector<1x128xf32>
    %21 = arith.addf %18, %20 : vector<1x128xf32>
    %c0_17 = arith.constant 0 : index
    %c0_18 = arith.constant 0 : index
    %22 = vector.load %arg8[%c0_17, %c0_18] : memref<1x128xf32, #tpu.memory_space<vmem>>, vector<1x128xf32>
    tpu.vector_store %arg8[%c0_17, %c0_18], %21 {strides = array<i32>} : memref<1x128xf32, #tpu.memory_space<vmem>>, vector<1x128xf32>,
    return
  }
  func.func @transform_0(%arg0: i32) -> (i32, i32) {
    %c0_i32 = arith.constant 0 : i32
    %c0_i32_0 = arith.constant 0 : i32
    return %c0_i32, %arg0 : i32, i32
  }
  func.func @transform_1(%arg0: i32) -> (i32, i32) {
    %c0_i32 = arith.constant 0 : i32
    %c0_i32_0 = arith.constant 0 : i32
    %c0_i32_1 = arith.constant 0 : i32
    return %c0_i32, %c0_i32_0 : i32, i32
  }
  func.func @transform_2(%arg0: i32) -> (i32, i32) {
    %c0_i32 = arith.constant 0 : i32
    %c0_i32_0 = arith.constant 0 : i32
    %c0_i32_1 = arith.constant 0 : i32
    return %c0_i32, %c0_i32_0 : i32, i32
  }
  func.func @transform_3(%arg0: i32) -> (i32, i32) {
    %c0_i32 = arith.constant 0 : i32
    %c0_i32_0 = arith.constant 0 : i32
    %c0_i32_1 = arith.constant 0 : i32
    return %c0_i32, %c0_i32_0 : i32, i32
  }
  func.func @transform_4(%arg0: i32) -> (i32, i32) {
    %c0_i32 = arith.constant 0 : i32
    %c0_i32_0 = arith.constant 0 : i32
    %c0_i32_1 = arith.constant 0 : i32
    return %c0_i32, %c0_i32_0 : i32, i32
  }
  func.func @transform_5(%arg0: i32) -> (i32, i32) {
    %c0_i32 = arith.constant 0 : i32
    %c0_i32_0 = arith.constant 0 : i32
    %c0_i32_1 = arith.constant 0 : i32
    return %c0_i32, %c0_i32_0 : i32, i32
  }
  func.func @transform_6(%arg0: i32) -> (i32, i32) {
    %c0_i32 = arith.constant 0 : i32
    %c0_i32_0 = arith.constant 0 : i32
    %c0_i32_1 = arith.constant 0 : i32
    return %c0_i32, %c0_i32_0 : i32, i32
  }
  func.func @transform_7(%arg0: i32) -> (i32, i32) {
    %c0_i32 = arith.constant 0 : i32
    %c0_i32_0 = arith.constant 0 : i32
    return %c0_i32, %arg0 : i32, i32
  }
}

</mosaic_0001>

<llo_original>
// kernel: tpu_custom_call.1
$region0: #{tpu_custom_call.1}
  #allocation0 [shape = 'u32[]', space=smem, size = 0x4, offset = 0x4, fixed_abs, tag = 'smem constant byte address 0x4 - core index']
  #allocation1 [shape = 'u32[144,128]{1,0:T(1,128)}', space=vmem, size = 0x12000, scoped, tag = 'internal scratch']
  #allocation2 [shape = 'f32[1,1]{1,0:T(1,128)S(6)}', space=smem, size = 0x200, scoped, tag = 'scoped memory for tpu_custom_call.1']
  %s0 = inlined_call_operand.vmem [shape: bf16[16,384], index: 0, kind: input, shape index: {}]
  %s1 = inlined_call_operand.vmem [shape: bf16[256,16], index: 1, kind: input, shape index: {}]
  %s2 = inlined_call_operand.vmem [shape: f32[256,1], index: 2, kind: input, shape index: {}]
  %s3 = inlined_call_operand.vmem [shape: bf16[256,256], index: 3, kind: input, shape index: {}]
  %s4 = inlined_call_operand.vmem [shape: f32[256,1], index: 4, kind: input, shape index: {}]
  %s5 = inlined_call_operand.vmem [shape: bf16[1,256], index: 5, kind: input, shape index: {}]
  %s6 = inlined_call_operand.<no memory space> [shape: f32[1,1], index: 6, kind: input, shape index: {}]
  %s7 = inlined_call_operand.hbm [shape: f32[1,384], index: 7, kind: output, shape index: {}]
  %s8 = sld [smem:[#allocation0]]
  $region102: #{tpu_custom_call.1} parent=0
    _
  %s10 = ssub.s32 1, %s8
  %s11 = scalar_select 0, %s10, %s8
  %12 = sst [smem:[#allocation2]] %s6
  $region1: #{tpu_custom_call.1} parent=0
    #allocation3 [shape = 'u8[8192]{0}', space=vmem, size = 0x2000, scoped, tag = 'input window, operand 0']
    #allocation4 [shape = 'u8[1024]{0}', space=vmem, size = 0x400, scoped, tag = 'output window, operand 0']
    #allocation5 [shape = 's32[2]{0}', space=sflag, size = 0x8, scoped, tag = 'scoped memory for tpu_custom_call.1']
    %13 = vsyncpa [#allocation5], 0
    %s14 = scalar_lea.sflag [#allocation5], 1
    %15 = vsyncpa %s14, 0
    loop: start=0, step=1, limit=5
    $region2: #{tpu_custom_call.1} parent=1 // loop_pre_header
      _
    $region3: #{tpu_custom_call.1} parent=1 // loop_header
      %s17 = sphi 0, %s21
      %p18 = scmp.ge.s32.totalorder %s17, 5
      %s27 = sphi 0, %s29
      %s30 = sphi 0, %s27
      %s31 = sphi 0, %s30
      %s47 = sphi 0, %s31
      %s51 = sphi 0, %s51
      %s53 = sphi 0, %s51
      %s54 = sphi 0, %s53
      %s68 = sphi 0, %s54
      %s72 = sphi 0, %s72
      %s74 = sphi 0, %s72
      %s75 = sphi 0, %s74
      %s89 = sphi 0, %s75
      %s93 = sphi 0, %s93
      %s95 = sphi 0, %s93
      %s96 = sphi 0, %s95
      %s110 = sphi 0, %s96
      %s114 = sphi 0, %s114
      %s116 = sphi 0, %s114
      %s117 = sphi 0, %s116
      %s131 = sphi 0, %s117
      %s135 = sphi 0, %s135
      %s137 = sphi 0, %s135
      %s138 = sphi 0, %s137
      %s152 = sphi 0, %s138
      %s156 = sphi 0, %s156
      %s158 = sphi 0, %s156
      %s159 = sphi 0, %s158
      %s173 = sphi 0, %s159
      %s179 = sphi 0, %s181
      %s182 = sphi 0, %s179
      %s183 = sphi 0, %s182
      %s199 = sphi 0, %s183
    $region4: #{tpu_custom_call.1} parent=1 // loop_header_branch
      %20 = sbr.rel (%p18) target = $region8
    $region5: #{tpu_custom_call.1} parent=1 // loop_body
      %s22 = ssub.s32 %s17, 1
      %s23 = ssub.s32 %s17, 2
      %s24 = sadd.s32 %s17, 1
      %s25 = ssub.s32 %s17, %s24
      %p26 = scmp.eq.s32.totalorder %s25, 0
      %s28 = sadd.s32 %s27, 1
      %s29 = scalar_select %p26, %s27, %s28
      %p32 = pneg %p26
      %p33 = scmp.eq.s32.totalorder %s17, 2
      %p34 = por %p32, %p33
      %p35 = scmp.ne.s32.totalorder %s27, %s30
      %p36 = scmp.eq.s32.totalorder %s17, 0
      %p37 = por %p35, %p36
      %p38 = scmp.ne.s32.totalorder %s27, %s30
      %p39 = scmp.eq.s32.totalorder %s22, 2
      %p40 = por %p38, %p39
      %p41 = scmp.ne.s32.totalorder %s30, %s31
      %p42 = scmp.eq.s32.totalorder %s22, 0
      %p43 = por %p41, %p42
      %p44 = scmp.ne.s32.totalorder %s30, %s31
      %p45 = scmp.eq.s32.totalorder %s23, 2
      %p46 = por %p44, %p45
      %p48 = scmp.ne.s32.totalorder %s31, %s47
      %p49 = scmp.eq.s32.totalorder %s23, 0
      %p50 = por %p48, %p49
      %s52 = sadd.s32 %s51, 1
      %p55 = scmp.eq.s32.totalorder %s17, 2
      %p56 = scmp.ne.s32.totalorder %s51, %s53
      %p57 = scmp.eq.s32.totalorder %s17, 0
      %p58 = por %p56, %p57
      %p59 = scmp.ne.s32.totalorder %s51, %s53
      %p60 = scmp.eq.s32.totalorder %s22, 2
      %p61 = por %p59, %p60
      %p62 = scmp.ne.s32.totalorder %s53, %s54
      %p63 = scmp.eq.s32.totalorder %s22, 0
      %p64 = por %p62, %p63
      %p65 = scmp.ne.s32.totalorder %s53, %s54
      %p66 = scmp.eq.s32.totalorder %s23, 2
      %p67 = por %p65, %p66
      %p69 = scmp.ne.s32.totalorder %s54, %s68
      %p70 = scmp.eq.s32.totalorder %s23, 0
      %p71 = por %p69, %p70
      %s73 = sadd.s32 %s72, 1
      %p76 = scmp.eq.s32.totalorder %s17, 2
      %p77 = scmp.ne.s32.totalorder %s72, %s74
      %p78 = scmp.eq.s32.totalorder %s17, 0
      %p79 = por %p77, %p78
      %p80 = scmp.ne.s32.totalorder %s72, %s74
      %p81 = scmp.eq.s32.totalorder %s22, 2
      %p82 = por %p80, %p81
      %p83 = scmp.ne.s32.totalorder %s74, %s75
      %p84 = scmp.eq.s32.totalorder %s22, 0
      %p85 = por %p83, %p84
      %p86 = scmp.ne.s32.totalorder %s74, %s75
      %p87 = scmp.eq.s32.totalorder %s23, 2
      %p88 = por %p86, %p87
      %p90 = scmp.ne.s32.totalorder %s75, %s89
      %p91 = scmp.eq.s32.totalorder %s23, 0
      %p92 = por %p90, %p91
      %s94 = sadd.s32 %s93, 1
      %p97 = scmp.eq.s32.totalorder %s17, 2
      %p98 = scmp.ne.s32.totalorder %s93, %s95
      %p99 = scmp.eq.s32.totalorder %s17, 0
      %p100 = por %p98, %p99
      %p101 = scmp.ne.s32.totalorder %s93, %s95
      %p102 = scmp.eq.s32.totalorder %s22, 2
      %p103 = por %p101, %p102
      %p104 = scmp.ne.s32.totalorder %s95, %s96
      %p105 = scmp.eq.s32.totalorder %s22, 0
      %p106 = por %p104, %p105
      %p107 = scmp.ne.s32.totalorder %s95, %s96
      %p108 = scmp.eq.s32.totalorder %s23, 2
      %p109 = por %p107, %p108
      %p111 = scmp.ne.s32.totalorder %s96, %s110
      %p112 = scmp.eq.s32.totalorder %s23, 0
      %p113 = por %p111, %p112
      %s115 = sadd.s32 %s114, 1
      %p118 = scmp.eq.s32.totalorder %s17, 2
      %p119 = scmp.ne.s32.totalorder %s114, %s116
      %p120 = scmp.eq.s32.totalorder %s17, 0
      %p121 = por %p119, %p120
      %p122 = scmp.ne.s32.totalorder %s114, %s116
      %p123 = scmp.eq.s32.totalorder %s22, 2
      %p124 = por %p122, %p123
      %p125 = scmp.ne.s32.totalorder %s116, %s117
      %p126 = scmp.eq.s32.totalorder %s22, 0
      %p127 = por %p125, %p126
      %p128 = scmp.ne.s32.totalorder %s116, %s117
      %p129 = scmp.eq.s32.totalorder %s23, 2
      %p130 = por %p128, %p129
      %p132 = scmp.ne.s32.totalorder %s117, %s131
      %p133 = scmp.eq.s32.totalorder %s23, 0
      %p134 = por %p132, %p133
      %s136 = sadd.s32 %s135, 1
      %p139 = scmp.eq.s32.totalorder %s17, 2
      %p140 = scmp.ne.s32.totalorder %s135, %s137
      %p141 = scmp.eq.s32.totalorder %s17, 0
      %p142 = por %p140, %p141
      %p143 = scmp.ne.s32.totalorder %s135, %s137
      %p144 = scmp.eq.s32.totalorder %s22, 2
      %p145 = por %p143, %p144
      %p146 = scmp.ne.s32.totalorder %s137, %s138
      %p147 = scmp.eq.s32.totalorder %s22, 0
      %p148 = por %p146, %p147
      %p149 = scmp.ne.s32.totalorder %s137, %s138
      %p150 = scmp.eq.s32.totalorder %s23, 2
      %p151 = por %p149, %p150
      %p153 = scmp.ne.s32.totalorder %s138, %s152
      %p154 = scmp.eq.s32.totalorder %s23, 0
      %p155 = por %p153, %p154
      %s157 = sadd.s32 %s156, 1
      %p160 = scmp.eq.s32.totalorder %s17, 2
      %p161 = scmp.ne.s32.totalorder %s156, %s158
      %p162 = scmp.eq.s32.totalorder %s17, 0
      %p163 = por %p161, %p162
      %p164 = scmp.ne.s32.totalorder %s156, %s158
      %p165 = scmp.eq.s32.totalorder %s22, 2
      %p166 = por %p164, %p165
      %p167 = scmp.ne.s32.totalorder %s158, %s159
      %p168 = scmp.eq.s32.totalorder %s22, 0
      %p169 = por %p167, %p168
      %p170 = scmp.ne.s32.totalorder %s158, %s159
      %p171 = scmp.eq.s32.totalorder %s23, 2
      %p172 = por %p170, %p171
      %p174 = scmp.ne.s32.totalorder %s159, %s173
      %p175 = scmp.eq.s32.totalorder %s23, 0
      %p176 = por %p174, %p175
      %s177 = ssub.s32 %s17, %s24
      %p178 = scmp.eq.s32.totalorder %s177, 0
      %s180 = sadd.s32 %s179, 1
      %s181 = scalar_select %p178, %s179, %s180
      %p184 = pneg %p178
      %p185 = scmp.eq.s32.totalorder %s17, 2
      %p186 = por %p184, %p185
      %p187 = scmp.ne.s32.totalorder %s179, %s182
      %p188 = scmp.eq.s32.totalorder %s17, 0
      %p189 = por %p187, %p188
      %p190 = scmp.ne.s32.totalorder %s179, %s182
      %p191 = scmp.eq.s32.totalorder %s22, 2
      %p192 = por %p190, %p191
      %p193 = scmp.ne.s32.totalorder %s182, %s183
      %p194 = scmp.eq.s32.totalorder %s22, 0
      %p195 = por %p193, %p194
      %p196 = scmp.ne.s32.totalorder %s182, %s183
      %p197 = scmp.eq.s32.totalorder %s23, 2
      %p198 = por %p196, %p197
      %p200 = scmp.ne.s32.totalorder %s183, %s199
      %p201 = scmp.eq.s32.totalorder %s23, 0
      %p202 = por %p200, %p201
      %p203 = scmp.le.s32.totalorder 1, %s17
      %p204 = scmp.lt.s32.totalorder %s17, 4
      %p205 = pnand %p203, %p204
      %p206 = pneg %p205
      // Predicated region
      $region9: #{tpu_custom_call.1} parent=5 // pred_check
        _
      $region10: #{tpu_custom_call.1} parent=5 // pred_check_branch
        %208 = sbr.rel (%p205) target = $region12
      $region11: #{tpu_custom_call.1} parent=5 // pred_region
        %s209 = ssub.s32 %s17, 1
        // Predicated region
        $region13: #{tpu_custom_call.1} parent=11 // pred_check
          %p210 = pneg %p64
        $region14: #{tpu_custom_call.1} parent=11 // pred_check_branch
          %212 = sbr.rel (%p210) target = $region16
        $region15: #{tpu_custom_call.1} parent=11 // pred_region
          _
        $region16: #{tpu_custom_call.1} parent=11 // pred_fallthru
          _
        // Predicated region
        $region17: #{tpu_custom_call.1} parent=11 // pred_check
          %p213 = pneg %p85
        $region18: #{tpu_custom_call.1} parent=11 // pred_check_branch
          %215 = sbr.rel (%p213) target = $region20
        $region19: #{tpu_custom_call.1} parent=11 // pred_region
          _
        $region20: #{tpu_custom_call.1} parent=11 // pred_fallthru
          _
        // Predicated region
        $region21: #{tpu_custom_call.1} parent=11 // pred_check
          %p216 = pneg %p106
        $region22: #{tpu_custom_call.1} parent=11 // pred_check_branch
          %218 = sbr.rel (%p216) target = $region24
        $region23: #{tpu_custom_call.1} parent=11 // pred_region
          _
        $region24: #{tpu_custom_call.1} parent=11 // pred_fallthru
          _
        // Predicated region
        $region25: #{tpu_custom_call.1} parent=11 // pred_check
          %p219 = pneg %p127
        $region26: #{tpu_custom_call.1} parent=11 // pred_check_branch
          %221 = sbr.rel (%p219) target = $region28
        $region27: #{tpu_custom_call.1} parent=11 // pred_region
          _
        $region28: #{tpu_custom_call.1} parent=11 // pred_fallthru
          _
        // Predicated region
        $region29: #{tpu_custom_call.1} parent=11 // pred_check
          %p222 = pneg %p148
        $region30: #{tpu_custom_call.1} parent=11 // pred_check_branch
          %224 = sbr.rel (%p222) target = $region32
        $region31: #{tpu_custom_call.1} parent=11 // pred_region
          _
        $region32: #{tpu_custom_call.1} parent=11 // pred_fallthru
          _
        // Predicated region
        $region33: #{tpu_custom_call.1} parent=11 // pred_check
          %p225 = pneg %p169
        $region34: #{tpu_custom_call.1} parent=11 // pred_check_branch
          %227 = sbr.rel (%p225) target = $region36
        $region35: #{tpu_custom_call.1} parent=11 // pred_region
          _
        $region36: #{tpu_custom_call.1} parent=11 // pred_fallthru
          _
      $region12: #{tpu_custom_call.1} parent=5 // pred_fallthru
        _
      %p228 = scmp.lt.s32.totalorder %s17, 3
      // Predicated region
      $region37: #{tpu_custom_call.1} parent=5 // pred_check
        %p229 = pneg %p228
      $region38: #{tpu_custom_call.1} parent=5 // pred_check_branch
        %231 = sbr.rel (%p229) target = $region40
      $region39: #{tpu_custom_call.1} parent=5 // pred_region
        // Predicated region
        $region41: #{tpu_custom_call.1} parent=39 // pred_check
          %p232 = pneg %p37
        $region42: #{tpu_custom_call.1} parent=39 // pred_check_branch
          %234 = sbr.rel (%p232) target = $region44
        $region43: #{tpu_custom_call.1} parent=39 // pred_region
          %s235 = sand.u32 %s27, 1
          %s236 = sand.u32 %s27, 1
          %s237 = smul.addr %s236, 8
          %s238 = scalar_lea.vmem [#allocation3], %s237
          %s239 = smul.addr %s17, 4
          %s240 = scalar_lea.vmem %s0, %s239
          // Predicated region
          $region45: #{tpu_custom_call.1} parent=43 // pred_check
            _
          $region46: #{tpu_custom_call.1} parent=43 // pred_check_branch
            %242 = sbr.rel (0) target = $region48
          $region47: #{tpu_custom_call.1} parent=43 // pred_region
            // Predicated region
            $region49: #{tpu_custom_call.1} parent=47 // pred_check
              _
            $region50: #{tpu_custom_call.1} parent=47 // pred_check_branch
              %244 = sbr.rel target = $region52
            $region51: #{tpu_custom_call.1} parent=47 // pred_region
              // Predicated region
              $region64: #{tpu_custom_call.1} parent=51 // pred_check
                _
              $region65: #{tpu_custom_call.1} parent=51 // pred_check_branch
                %261 = sbr.rel (0) target = $region67
              $region66: #{tpu_custom_call.1} parent=51 // pred_region
                loop: start=0, step=1, limit=1
                $region68: #{tpu_custom_call.1} parent=66 // loop_pre_header
                  _
                $region69: #{tpu_custom_call.1} parent=66 // loop_header
                  %s263 = sphi 0, %s267
                  %p264 = scmp.ge.s32.totalorder %s263, 1
                  %s268 = sphi %s240, %s240
                  %s269 = sphi %s238, %s238
                $region70: #{tpu_custom_call.1} parent=66 // loop_header_branch
                  %266 = sbr.rel (%p264) target = $region74
                $region71: #{tpu_custom_call.1} parent=66 // loop_body
                  _
                $region72: #{tpu_custom_call.1} parent=66 // loop_footer
                  %s267 = sadd.s32 1, %s263
                $region73: #{tpu_custom_call.1} parent=66 // loop_footer_branch
                  %262 = sbr.rel target = $region69
                $region74: #{tpu_custom_call.1} parent=66 // loop_exit
                  _
                loop: start=0, step=1, limit=1
                $region75: #{tpu_custom_call.1} parent=66 // loop_pre_header
                  _
                $region76: #{tpu_custom_call.1} parent=66 // loop_header
                  %s272 = sphi 0, %s276
                  %p273 = scmp.ge.s32.totalorder %s272, 1
                  %s277 = sphi %s240, %s240
                  %s278 = sphi %s238, %s238
                $region77: #{tpu_custom_call.1} parent=66 // loop_header_branch
                  %275 = sbr.rel (%p273) target = $region81
                $region78: #{tpu_custom_call.1} parent=66 // loop_body
                  %v279 = vld [vmem:[%s277] sm:$0xf]
                  %280 = vst [vmem:[%s278] sm:$0xf] %v279
                  %v281 = vld [vmem:[%s277 + $0xc] sm:$0xf]
                  %282 = vst [vmem:[%s278 + $0x4] sm:$0xf] %v281
                $region79: #{tpu_custom_call.1} parent=66 // loop_footer
                  %s276 = sadd.s32 1, %s272
                $region80: #{tpu_custom_call.1} parent=66 // loop_footer_branch
                  %271 = sbr.rel target = $region76
                $region81: #{tpu_custom_call.1} parent=66 // loop_exit
                  _
              $region67: #{tpu_custom_call.1} parent=51 // pred_fallthru
                _
            $region52: #{tpu_custom_call.1} parent=47 // pred_fallthru
              _
            // Predicated region
            $region53: #{tpu_custom_call.1} parent=47 // pred_check
              _
            $region54: #{tpu_custom_call.1} parent=47 // pred_check_branch
              %246 = sbr.rel (0) target = $region56
            $region55: #{tpu_custom_call.1} parent=47 // pred_region
              loop: start=0, step=1, limit=1
              $region57: #{tpu_custom_call.1} parent=55 // loop_pre_header
                _
              $region58: #{tpu_custom_call.1} parent=55 // loop_header
                %s249 = sphi 0, %s253
                %p250 = scmp.ge.s32.totalorder %s249, 1
                %s254 = sphi %s240, %s240
                %s255 = sphi %s238, %s238
              $region59: #{tpu_custom_call.1} parent=55 // loop_header_branch
                %252 = sbr.rel (%p250) target = $region63
              $region60: #{tpu_custom_call.1} parent=55 // loop_body
                %v256 = vld [vmem:[%s254] sm:$0xf]
                %257 = vst [vmem:[%s255] sm:$0xf] %v256
                %v258 = vld [vmem:[%s254 + $0xc] sm:$0xf]
                %259 = vst [vmem:[%s255 + $0x4] sm:$0xf] %v258
              $region61: #{tpu_custom_call.1} parent=55 // loop_footer
                %s253 = sadd.s32 1, %s249
              $region62: #{tpu_custom_call.1} parent=55 // loop_footer_branch
                %248 = sbr.rel target = $region58
              $region63: #{tpu_custom_call.1} parent=55 // loop_exit
                _
            $region56: #{tpu_custom_call.1} parent=47 // pred_fallthru
              _
          $region48: #{tpu_custom_call.1} parent=43 // pred_fallthru
            _
          %283 = vnop
        $region44: #{tpu_custom_call.1} parent=39 // pred_fallthru
          _
      $region40: #{tpu_custom_call.1} parent=5 // pred_fallthru
        _
      %p284 = scmp.le.s32.totalorder 1, %s17
      %p285 = scmp.lt.s32.totalorder %s17, 4
      %p286 = pnand %p284, %p285
      %p287 = pneg %p286
      // Predicated region
      $region82: #{tpu_custom_call.1} parent=5 // pred_check
        _
      $region83: #{tpu_custom_call.1} parent=5 // pred_check_branch
        %289 = sbr.rel (%p286) target = $region85
      $region84: #{tpu_custom_call.1} parent=5 // pred_region
        %s290 = ssub.s32 %s17, 1
        %s291 = sand.u32 %s30, 1
        %s292 = sand.u32 %s30, 1
        %s293 = smul.addr %s292, 8
        %s294 = scalar_lea.vmem [#allocation3], %s293
        // Predicated region
        $region86: #{tpu_custom_call.1} parent=84 // pred_check
          %p295 = pneg %p43
        $region87: #{tpu_custom_call.1} parent=84 // pred_check_branch
          %297 = sbr.rel (%p295) target = $region89
        $region88: #{tpu_custom_call.1} parent=84 // pred_region
          _
        $region89: #{tpu_custom_call.1} parent=84 // pred_fallthru
          _
        %s298 = sand.u32 %s30, 1
        %s299 = sand.u32 %s30, 1
        %s300 = smul.addr %s299, 8
        %s301 = scalar_lea.vmem [#allocation3], %s300
        %p302 = pneg %p43
        %p303 = pneg %p40
        %p304 = pneg %p64
        %p305 = pneg %p61
        %p306 = pneg %p85
        %p307 = pneg %p82
        %p308 = pneg %p106
        %p309 = pneg %p103
        %p310 = pneg %p127
        %p311 = pneg %p124
        %p312 = pneg %p148
        %p313 = pneg %p145
        %p314 = pneg %p169
        %p315 = pneg %p166
        %p316 = pneg %p195
        %p317 = pneg %p192
        %s318 = sand.u32 %s182, 1
        %s319 = scalar_lea.sflag [#allocation5], %s318
        %s320 = sand.u32 %s182, 1
        %s321 = scalar_lea.vmem [#allocation4], %s320
        %v323 = vld [vmem:[%s1] sm:$0xf]
        %v324 = vld [vmem:[%s1 + $0x4] sm:$0xf]
        %v325 = vld [vmem:[%s1 + $0x8] sm:$0xf]
        %v326 = vld [vmem:[%s1 + $0xc] sm:$0xf]
        %v327 = vld [vmem:[%s1 + $0x10] sm:$0xf]
        %v328 = vld [vmem:[%s1 + $0x14] sm:$0xf]
        %v329 = vld [vmem:[%s1 + $0x18] sm:$0xf]
        %v330 = vld [vmem:[%s1 + $0x1c] sm:$0xf]
        %v331 = vld [vmem:[%s1 + $0x20] sm:$0xf]
        %v332 = vld [vmem:[%s1 + $0x24] sm:$0xf]
        %v333 = vld [vmem:[%s1 + $0x28] sm:$0xf]
        %v334 = vld [vmem:[%s1 + $0x2c] sm:$0xf]
        %v335 = vld [vmem:[%s1 + $0x30] sm:$0xf]
        %v336 = vld [vmem:[%s1 + $0x34] sm:$0xf]
        %v337 = vld [vmem:[%s1 + $0x38] sm:$0xf]
        %v338 = vld [vmem:[%s1 + $0x3c] sm:$0xf]
        %v339 = vld [vmem:[%s1 + $0x40] sm:$0xf]
        %v340 = vld [vmem:[%s1 + $0x44] sm:$0xf]
        %v341 = vld [vmem:[%s1 + $0x48] sm:$0xf]
        %v342 = vld [vmem:[%s1 + $0x4c] sm:$0xf]
        %v343 = vld [vmem:[%s1 + $0x50] sm:$0xf]
        %v344 = vld [vmem:[%s1 + $0x54] sm:$0xf]
        %v345 = vld [vmem:[%s1 + $0x58] sm:$0xf]
        %v346 = vld [vmem:[%s1 + $0x5c] sm:$0xf]
        %v347 = vld [vmem:[%s1 + $0x60] sm:$0xf]
        %v348 = vld [vmem:[%s1 + $0x64] sm:$0xf]
        %v349 = vld [vmem:[%s1 + $0x68] sm:$0xf]
        %v350 = vld [vmem:[%s1 + $0x6c] sm:$0xf]
        %v351 = vld [vmem:[%s1 + $0x70] sm:$0xf]
        %v352 = vld [vmem:[%s1 + $0x74] sm:$0xf]
        %v353 = vld [vmem:[%s1 + $0x78] sm:$0xf]
        %v354 = vld [vmem:[%s1 + $0x7c] sm:$0xf]
        %v355 = vld [vmem:[%s294] sm:$0xf]
        %v356 = vld [vmem:[%s294 + $0x4] sm:$0xf]
        %v357 = vld [vmem:[%s2] sm:$0xff]
        %v358 = vld [vmem:[%s2 + $0x8] sm:$0xff]
        %v359 = vld [vmem:[%s2 + $0x10] sm:$0xff]
        %v360 = vld [vmem:[%s2 + $0x18] sm:$0xff]
        %v361 = vld [vmem:[%s2 + $0x20] sm:$0xff]
        %v362 = vld [vmem:[%s2 + $0x28] sm:$0xff]
        %v363 = vld [vmem:[%s2 + $0x30] sm:$0xff]
        %v364 = vld [vmem:[%s2 + $0x38] sm:$0xff]
        %v365 = vld [vmem:[%s2 + $0x40] sm:$0xff]
        %v366 = vld [vmem:[%s2 + $0x48] sm:$0xff]
        %v367 = vld [vmem:[%s2 + $0x50] sm:$0xff]
        %v368 = vld [vmem:[%s2 + $0x58] sm:$0xff]
        %v369 = vld [vmem:[%s2 + $0x60] sm:$0xff]
        %v370 = vld [vmem:[%s2 + $0x68] sm:$0xff]
        %v371 = vld [vmem:[%s2 + $0x70] sm:$0xff]
        %v372 = vld [vmem:[%s2 + $0x78] sm:$0xff]
        %v373 = vld [vmem:[%s2 + $0x80] sm:$0xff]
        %v374 = vld [vmem:[%s2 + $0x88] sm:$0xff]
        %v375 = vld [vmem:[%s2 + $0x90] sm:$0xff]
        %v376 = vld [vmem:[%s2 + $0x98] sm:$0xff]
        %v377 = vld [vmem:[%s2 + $0xa0] sm:$0xff]
        %v378 = vld [vmem:[%s2 + $0xa8] sm:$0xff]
        %v379 = vld [vmem:[%s2 + $0xb0] sm:$0xff]
        %v380 = vld [vmem:[%s2 + $0xb8] sm:$0xff]
        %v381 = vld [vmem:[%s2 + $0xc0] sm:$0xff]
        %v382 = vld [vmem:[%s2 + $0xc8] sm:$0xff]
        %v383 = vld [vmem:[%s2 + $0xd0] sm:$0xff]
        %v384 = vld [vmem:[%s2 + $0xd8] sm:$0xff]
        %v385 = vld [vmem:[%s2 + $0xe0] sm:$0xff]
        %v386 = vld [vmem:[%s2 + $0xe8] sm:$0xff]
        %v387 = vld [vmem:[%s2 + $0xf0] sm:$0xff]
        %v388 = vld [vmem:[%s2 + $0xf8] sm:$0xff]
        %390 = vset.pattern.permute.xlu0 0
        %391 = vperm.xlu0 %390, %v357
        %v392 = vpop.permute.xlu0 %391
        %395 = vset.pattern.permute.xlu0 0
        %396 = vperm.xlu0 %395, %v358
        %v397 = vpop.permute.xlu0 %396
        %400 = vset.pattern.permute.xlu0 0
        %401 = vperm.xlu0 %400, %v359
        %v402 = vpop.permute.xlu0 %401
        %405 = vset.pattern.permute.xlu0 0
        %406 = vperm.xlu0 %405, %v360
        %v407 = vpop.permute.xlu0 %406
        %410 = vset.pattern.permute.xlu0 0
        %411 = vperm.xlu0 %410, %v361
        %v412 = vpop.permute.xlu0 %411
        %415 = vset.pattern.permute.xlu0 0
        %416 = vperm.xlu0 %415, %v362
        %v417 = vpop.permute.xlu0 %416
        %420 = vset.pattern.permute.xlu0 0
        %421 = vperm.xlu0 %420, %v363
        %v422 = vpop.permute.xlu0 %421
        %425 = vset.pattern.permute.xlu0 0
        %426 = vperm.xlu0 %425, %v364
        %v427 = vpop.permute.xlu0 %426
        %430 = vset.pattern.permute.xlu0 0
        %431 = vperm.xlu0 %430, %v365
        %v432 = vpop.permute.xlu0 %431
        %435 = vset.pattern.permute.xlu0 0
        %436 = vperm.xlu0 %435, %v366
        %v437 = vpop.permute.xlu0 %436
        %440 = vset.pattern.permute.xlu0 0
        %441 = vperm.xlu0 %440, %v367
        %v442 = vpop.permute.xlu0 %441
        %445 = vset.pattern.permute.xlu0 0
        %446 = vperm.xlu0 %445, %v368
        %v447 = vpop.permute.xlu0 %446
        %450 = vset.pattern.permute.xlu0 0
        %451 = vperm.xlu0 %450, %v369
        %v452 = vpop.permute.xlu0 %451
        %455 = vset.pattern.permute.xlu0 0
        %456 = vperm.xlu0 %455, %v370
        %v457 = vpop.permute.xlu0 %456
        %460 = vset.pattern.permute.xlu0 0
        %461 = vperm.xlu0 %460, %v371
        %v462 = vpop.permute.xlu0 %461
        %465 = vset.pattern.permute.xlu0 0
        %466 = vperm.xlu0 %465, %v372
        %v467 = vpop.permute.xlu0 %466
        %470 = vset.pattern.permute.xlu0 0
        %471 = vperm.xlu0 %470, %v373
        %v472 = vpop.permute.xlu0 %471
        %475 = vset.pattern.permute.xlu0 0
        %476 = vperm.xlu0 %475, %v374
        %v477 = vpop.permute.xlu0 %476
        %480 = vset.pattern.permute.xlu0 0
        %481 = vperm.xlu0 %480, %v375
        %v482 = vpop.permute.xlu0 %481
        %485 = vset.pattern.permute.xlu0 0
        %486 = vperm.xlu0 %485, %v376
        %v487 = vpop.permute.xlu0 %486
        %490 = vset.pattern.permute.xlu0 0
        %491 = vperm.xlu0 %490, %v377
        %v492 = vpop.permute.xlu0 %491
        %495 = vset.pattern.permute.xlu0 0
        %496 = vperm.xlu0 %495, %v378
        %v497 = vpop.permute.xlu0 %496
        %500 = vset.pattern.permute.xlu0 0
        %501 = vperm.xlu0 %500, %v379
        %v502 = vpop.permute.xlu0 %501
        %505 = vset.pattern.permute.xlu0 0
        %506 = vperm.xlu0 %505, %v380
        %v507 = vpop.permute.xlu0 %506
        %510 = vset.pattern.permute.xlu0 0
        %511 = vperm.xlu0 %510, %v381
        %v512 = vpop.permute.xlu0 %511
        %515 = vset.pattern.permute.xlu0 0
        %516 = vperm.xlu0 %515, %v382
        %v517 = vpop.permute.xlu0 %516
        %520 = vset.pattern.permute.xlu0 0
        %521 = vperm.xlu0 %520, %v383
        %v522 = vpop.permute.xlu0 %521
        %525 = vset.pattern.permute.xlu0 0
        %526 = vperm.xlu0 %525, %v384
        %v527 = vpop.permute.xlu0 %526
        %530 = vset.pattern.permute.xlu0 0
        %531 = vperm.xlu0 %530, %v385
        %v532 = vpop.permute.xlu0 %531
        %535 = vset.pattern.permute.xlu0 0
        %536 = vperm.xlu0 %535, %v386
        %v537 = vpop.permute.xlu0 %536
        %540 = vset.pattern.permute.xlu0 0
        %541 = vperm.xlu0 %540, %v387
        %v542 = vpop.permute.xlu0 %541
        %545 = vset.pattern.permute.xlu0 0
        %546 = vperm.xlu0 %545, %v388
        %v547 = vpop.permute.xlu0 %546
        %v581 = vunpack.c.l.b16 %v323
        %v582 = vunpack.c.l.b16 %v324
        %v583 = vunpack.c.l.b16 %v325
        %v584 = vunpack.c.l.b16 %v326
        %v585 = vunpack.c.l.b16 %v327
        %v586 = vunpack.c.l.b16 %v328
        %v587 = vunpack.c.l.b16 %v329
        %v588 = vunpack.c.l.b16 %v330
        %v589 = vunpack.c.l.b16 %v331
        %v590 = vunpack.c.l.b16 %v332
        %v591 = vunpack.c.l.b16 %v333
        %v592 = vunpack.c.l.b16 %v334
        %v593 = vunpack.c.l.b16 %v335
        %v594 = vunpack.c.l.b16 %v336
        %v595 = vunpack.c.l.b16 %v337
        %v596 = vunpack.c.l.b16 %v338
        %v597 = vunpack.c.l.b16 %v339
        %v598 = vunpack.c.l.b16 %v340
        %v599 = vunpack.c.l.b16 %v341
        %v600 = vunpack.c.l.b16 %v342
        %v601 = vunpack.c.l.b16 %v343
        %v602 = vunpack.c.l.b16 %v344
        %v603 = vunpack.c.l.b16 %v345
        %v604 = vunpack.c.l.b16 %v346
        %v605 = vunpack.c.l.b16 %v347
        %v606 = vunpack.c.l.b16 %v348
        %v607 = vunpack.c.l.b16 %v349
        %v608 = vunpack.c.l.b16 %v350
        %v609 = vunpack.c.l.b16 %v351
        %v610 = vunpack.c.l.b16 %v352
        %v611 = vunpack.c.l.b16 %v353
        %v612 = vunpack.c.l.b16 %v354
        %v613 = vpack.c.b16 %v582, %v581
        %v614 = vpack.c.b16 %v584, %v583
        %v615 = vpack.c.b16 %v586, %v585
        %v616 = vpack.c.b16 %v588, %v587
        %v617 = vpack.c.b16 %v590, %v589
        %v618 = vpack.c.b16 %v592, %v591
        %v619 = vpack.c.b16 %v594, %v593
        %v620 = vpack.c.b16 %v596, %v595
        %v621 = vpack.c.b16 %v598, %v597
        %v622 = vpack.c.b16 %v600, %v599
        %v623 = vpack.c.b16 %v602, %v601
        %v624 = vpack.c.b16 %v604, %v603
        %v625 = vpack.c.b16 %v606, %v605
        %v626 = vpack.c.b16 %v608, %v607
        %v627 = vpack.c.b16 %v610, %v609
        %v628 = vpack.c.b16 %v612, %v611
        %v631 = vunpack.c.l.b16 %v355
        %v632 = vunpack.c.l.b16 %v356
        %v633 = vpack.c.b16 %v632, %v631
        %vm635 = vcmask 130048
        %v637 = vsel %vm635, %v613, 0
        %v640 = vsel %vm635, %v614, 0
        %v643 = vsel %vm635, %v615, 0
        %v646 = vsel %vm635, %v616, 0
        %v649 = vsel %vm635, %v617, 0
        %v652 = vsel %vm635, %v618, 0
        %v655 = vsel %vm635, %v619, 0
        %v658 = vsel %vm635, %v620, 0
        %v661 = vsel %vm635, %v621, 0
        %v664 = vsel %vm635, %v622, 0
        %v667 = vsel %vm635, %v623, 0
        %v670 = vsel %vm635, %v624, 0
        %v673 = vsel %vm635, %v625, 0
        %v676 = vsel %vm635, %v626, 0
        %v679 = vsel %vm635, %v627, 0
        %v682 = vsel %vm635, %v628, 0
        %684 = vmatprep.subr.bf16.mxu0 0
        %685 = vmatpush1.bf16.msra.mxu0 %v633
        %686 = vmatprep.subr.bf16.mxu0 0
        %687 = vmatpush1.bf16.msra.mxu0 0
        %688 = vmatprep.subr.bf16.mxu0 0
        %689 = vmatpush1.bf16.msra.mxu0 0
        %690 = vmatprep.subr.bf16.mxu0 0
        %691 = vmatpush1.bf16.msra.mxu0 0
        %692 = vmatprep.subr.bf16.mxu0 0
        %693 = vmatpush1.bf16.msra.mxu0 0
        %694 = vmatprep.subr.bf16.mxu0 0
        %695 = vmatpush1.bf16.msra.mxu0 0
        %696 = vmatprep.subr.bf16.mxu0 0
        %697 = vmatpush1.bf16.msra.mxu0 0
        %698 = vmatprep.subr.bf16.mxu0 0
        %699 = vmatpush1.bf16.msra.mxu0 0
        %700 = vmatprep.subr.bf16.mxu0 0
        %701 = vmatpush1.bf16.msra.mxu0 0
        %702 = vmatprep.subr.bf16.mxu0 0
        %703 = vmatpush1.bf16.msra.mxu0 0
        %704 = vmatprep.subr.bf16.mxu0 0
        %705 = vmatpush1.bf16.msra.mxu0 0
        %706 = vmatprep.subr.bf16.mxu0 0
        %707 = vmatpush1.bf16.msra.mxu0 0
        %708 = vmatprep.subr.bf16.mxu0 0
        %709 = vmatpush1.bf16.msra.mxu0 0
        %710 = vmatprep.subr.bf16.mxu0 0
        %711 = vmatpush1.bf16.msra.mxu0 0
        %712 = vmatprep.subr.bf16.mxu0 0
        %713 = vmatpush1.bf16.msra.mxu0 0
        %714 = vmatprep.subr.bf16.mxu0 0
        %715 = vmatpush1.bf16.msra.mxu0 0
        %716 = vmatprep.mubr.bf16.mxu0 0
        %717 = vmatmul.mubr.bf16.gmra.mrb[0].mxu0 %v637
        %v718 = vpop.f32.mrb[0].mxu0
        %v719 = vadd.f32 %v392, %v718
        %v720 = vpop.f32.mrb[0].mxu0
        %v721 = vpop.f32.mrb[0].mxu0
        %v722 = vadd.f32 %v397, %v721
        %v723 = vpop.f32.mrb[0].mxu0
        %724 = vmatprep.mubr.bf16.mxu0 0
        %725 = vmatmul.mubr.bf16.gmra.mrb[0].mxu0 %v640
        %v726 = vpop.f32.mrb[0].mxu0
        %v727 = vadd.f32 %v402, %v726
        %v728 = vpop.f32.mrb[0].mxu0
        %v729 = vpop.f32.mrb[0].mxu0
        %v730 = vadd.f32 %v407, %v729
        %v731 = vpop.f32.mrb[0].mxu0
        %732 = vmatprep.mubr.bf16.mxu0 0
        %733 = vmatmul.mubr.bf16.gmra.mrb[0].mxu0 %v643
        %v734 = vpop.f32.mrb[0].mxu0
        %v735 = vadd.f32 %v412, %v734
        %v736 = vpop.f32.mrb[0].mxu0
        %v737 = vpop.f32.mrb[0].mxu0
        %v738 = vadd.f32 %v417, %v737
        %v739 = vpop.f32.mrb[0].mxu0
        %740 = vmatprep.mubr.bf16.mxu0 0
        %741 = vmatmul.mubr.bf16.gmra.mrb[0].mxu0 %v646
        %v742 = vpop.f32.mrb[0].mxu0
        %v743 = vadd.f32 %v422, %v742
        %v744 = vpop.f32.mrb[0].mxu0
        %v745 = vpop.f32.mrb[0].mxu0
        %v746 = vadd.f32 %v427, %v745
        %v747 = vpop.f32.mrb[0].mxu0
        %748 = vmatprep.mubr.bf16.mxu0 0
        %749 = vmatmul.mubr.bf16.gmra.mrb[0].mxu0 %v649
        %v750 = vpop.f32.mrb[0].mxu0
        %v751 = vadd.f32 %v432, %v750
        %v752 = vpop.f32.mrb[0].mxu0
        %v753 = vpop.f32.mrb[0].mxu0
        %v754 = vadd.f32 %v437, %v753
        %v755 = vpop.f32.mrb[0].mxu0
        %756 = vmatprep.mubr.bf16.mxu0 0
        %757 = vmatmul.mubr.bf16.gmra.mrb[0].mxu0 %v652
        %v758 = vpop.f32.mrb[0].mxu0
        %v759 = vadd.f32 %v442, %v758
        %v760 = vpop.f32.mrb[0].mxu0
        %v761 = vpop.f32.mrb[0].mxu0
        %v762 = vadd.f32 %v447, %v761
        %v763 = vpop.f32.mrb[0].mxu0
        %764 = vmatprep.mubr.bf16.mxu0 0
        %765 = vmatmul.mubr.bf16.gmra.mrb[0].mxu0 %v655
        %v766 = vpop.f32.mrb[0].mxu0
        %v767 = vadd.f32 %v452, %v766
        %v768 = vpop.f32.mrb[0].mxu0
        %v769 = vpop.f32.mrb[0].mxu0
        %v770 = vadd.f32 %v457, %v769
        %v771 = vpop.f32.mrb[0].mxu0
        %772 = vmatprep.mubr.bf16.mxu0 0
        %773 = vmatmul.mubr.bf16.gmra.mrb[0].mxu0 %v658
        %v774 = vpop.f32.mrb[0].mxu0
        %v775 = vadd.f32 %v462, %v774
        %v776 = vpop.f32.mrb[0].mxu0
        %v777 = vpop.f32.mrb[0].mxu0
        %v778 = vadd.f32 %v467, %v777
        %v779 = vpop.f32.mrb[0].mxu0
        %780 = vmatprep.mubr.bf16.mxu0 0
        %781 = vmatmul.mubr.bf16.gmra.mrb[0].mxu0 %v661
        %v782 = vpop.f32.mrb[0].mxu0
        %v783 = vadd.f32 %v472, %v782
        %v784 = vpop.f32.mrb[0].mxu0
        %v785 = vpop.f32.mrb[0].mxu0
        %v786 = vadd.f32 %v477, %v785
        %v787 = vpop.f32.mrb[0].mxu0
        %788 = vmatprep.mubr.bf16.mxu0 0
        %789 = vmatmul.mubr.bf16.gmra.mrb[0].mxu0 %v664
        %v790 = vpop.f32.mrb[0].mxu0
        %v791 = vadd.f32 %v482, %v790
        %v792 = vpop.f32.mrb[0].mxu0
        %v793 = vpop.f32.mrb[0].mxu0
        %v794 = vadd.f32 %v487, %v793
        %v795 = vpop.f32.mrb[0].mxu0
        %796 = vmatprep.mubr.bf16.mxu0 0
        %797 = vmatmul.mubr.bf16.gmra.mrb[0].mxu0 %v667
        %v798 = vpop.f32.mrb[0].mxu0
        %v799 = vadd.f32 %v492, %v798
        %v800 = vpop.f32.mrb[0].mxu0
        %v801 = vpop.f32.mrb[0].mxu0
        %v802 = vadd.f32 %v497, %v801
        %v803 = vpop.f32.mrb[0].mxu0
        %804 = vmatprep.mubr.bf16.mxu0 0
        %805 = vmatmul.mubr.bf16.gmra.mrb[0].mxu0 %v670
        %v806 = vpop.f32.mrb[0].mxu0
        %v807 = vadd.f32 %v502, %v806
        %v808 = vpop.f32.mrb[0].mxu0
        %v809 = vpop.f32.mrb[0].mxu0
        %v810 = vadd.f32 %v507, %v809
        %v811 = vpop.f32.mrb[0].mxu0
        %812 = vmatprep.mubr.bf16.mxu0 0
        %813 = vmatmul.mubr.bf16.gmra.mrb[0].mxu0 %v673
        %v814 = vpop.f32.mrb[0].mxu0
        %v815 = vadd.f32 %v512, %v814
        %v816 = vpop.f32.mrb[0].mxu0
        %v817 = vpop.f32.mrb[0].mxu0
        %v818 = vadd.f32 %v517, %v817
        %v819 = vpop.f32.mrb[0].mxu0
        %820 = vmatprep.mubr.bf16.mxu0 0
        %821 = vmatmul.mubr.bf16.gmra.mrb[0].mxu0 %v676
        %v822 = vpop.f32.mrb[0].mxu0
        %v823 = vadd.f32 %v522, %v822
        %v824 = vpop.f32.mrb[0].mxu0
        %v825 = vpop.f32.mrb[0].mxu0
        %v826 = vadd.f32 %v527, %v825
        %v827 = vpop.f32.mrb[0].mxu0
        %828 = vmatprep.mubr.bf16.mxu0 0
        %829 = vmatmul.mubr.bf16.gmra.mrb[0].mxu0 %v679
        %v830 = vpop.f32.mrb[0].mxu0
        %v831 = vadd.f32 %v532, %v830
        %v832 = vpop.f32.mrb[0].mxu0
        %v833 = vpop.f32.mrb[0].mxu0
        %v834 = vadd.f32 %v537, %v833
        %v835 = vpop.f32.mrb[0].mxu0
        %836 = vmatprep.mubr.bf16.mxu0 0
        %837 = vmatmul.mubr.bf16.gmra.mrb[0].mxu0 %v682
        %v838 = vpop.f32.mrb[0].mxu0
        %v839 = vadd.f32 %v542, %v838
        %v840 = vpop.f32.mrb[0].mxu0
        %v841 = vpop.f32.mrb[0].mxu0
        %v842 = vadd.f32 %v547, %v841
        %v843 = vpop.f32.mrb[0].mxu0
        %844 = vdwg.mxu0
        %v845 = vmax.f32 %v719, 0.0
        %v846 = vmax.f32 %v722, 0.0
        %v847 = vmax.f32 %v727, 0.0
        %v848 = vmax.f32 %v730, 0.0
        %v849 = vmax.f32 %v735, 0.0
        %v850 = vmax.f32 %v738, 0.0
        %v851 = vmax.f32 %v743, 0.0
        %v852 = vmax.f32 %v746, 0.0
        %v853 = vmax.f32 %v751, 0.0
        %v854 = vmax.f32 %v754, 0.0
        %v855 = vmax.f32 %v759, 0.0
        %v856 = vmax.f32 %v762, 0.0
        %v857 = vmax.f32 %v767, 0.0
        %v858 = vmax.f32 %v770, 0.0
        %v859 = vmax.f32 %v775, 0.0
        %v860 = vmax.f32 %v778, 0.0
        %v861 = vmax.f32 %v783, 0.0
        %v862 = vmax.f32 %v786, 0.0
        %v863 = vmax.f32 %v791, 0.0
        %v864 = vmax.f32 %v794, 0.0
        %v865 = vmax.f32 %v799, 0.0
        %v866 = vmax.f32 %v802, 0.0
        %v867 = vmax.f32 %v807, 0.0
        %v868 = vmax.f32 %v810, 0.0
        %v869 = vmax.f32 %v815, 0.0
        %v870 = vmax.f32 %v818, 0.0
        %v871 = vmax.f32 %v823, 0.0
        %v872 = vmax.f32 %v826, 0.0
        %v873 = vmax.f32 %v831, 0.0
        %v874 = vmax.f32 %v834, 0.0
        %v875 = vmax.f32 %v839, 0.0
        %v876 = vmax.f32 %v842, 0.0
        %v877 = vld [vmem:[%s3] sm:$0xff]
        %v878 = vld [vmem:[%s3 + $0x8] sm:$0xff]
        %v879 = vld [vmem:[%s3 + $0x10] sm:$0xff]
        %v880 = vld [vmem:[%s3 + $0x18] sm:$0xff]
        %v881 = vld [vmem:[%s3 + $0x20] sm:$0xff]
        %v882 = vld [vmem:[%s3 + $0x28] sm:$0xff]
        %v883 = vld [vmem:[%s3 + $0x30] sm:$0xff]
        %v884 = vld [vmem:[%s3 + $0x38] sm:$0xff]
        %v885 = vld [vmem:[%s3 + $0x40] sm:$0xff]
        %v886 = vld [vmem:[%s3 + $0x48] sm:$0xff]
        %v887 = vld [vmem:[%s3 + $0x50] sm:$0xff]
        %v888 = vld [vmem:[%s3 + $0x58] sm:$0xff]
        %v889 = vld [vmem:[%s3 + $0x60] sm:$0xff]
        %v890 = vld [vmem:[%s3 + $0x68] sm:$0xff]
        %v891 = vld [vmem:[%s3 + $0x70] sm:$0xff]
        %v892 = vld [vmem:[%s3 + $0x78] sm:$0xff]
        %v893 = vld [vmem:[%s3 + $0x80] sm:$0xff]
        %v894 = vld [vmem:[%s3 + $0x88] sm:$0xff]
        %v895 = vld [vmem:[%s3 + $0x90] sm:$0xff]
        %v896 = vld [vmem:[%s3 + $0x98] sm:$0xff]
        %v897 = vld [vmem:[%s3 + $0xa0] sm:$0xff]
        %v898 = vld [vmem:[%s3 + $0xa8] sm:$0xff]
        %v899 = vld [vmem:[%s3 + $0xb0] sm:$0xff]
        %v900 = vld [vmem:[%s3 + $0xb8] sm:$0xff]
        %v901 = vld [vmem:[%s3 + $0xc0] sm:$0xff]
        %v902 = vld [vmem:[%s3 + $0xc8] sm:$0xff]
        %v903 = vld [vmem:[%s3 + $0xd0] sm:$0xff]
        %v904 = vld [vmem:[%s3 + $0xd8] sm:$0xff]
        %v905 = vld [vmem:[%s3 + $0xe0] sm:$0xff]
        %v906 = vld [vmem:[%s3 + $0xe8] sm:$0xff]
        %v907 = vld [vmem:[%s3 + $0xf0] sm:$0xff]
        %v908 = vld [vmem:[%s3 + $0xf8] sm:$0xff]
        %v909 = vpack.c.bf16 %v846, %v845
        %v910 = vpack.c.bf16 %v848, %v847
        %v911 = vpack.c.bf16 %v850, %v849
        %v912 = vpack.c.bf16 %v852, %v851
        %v913 = vpack.c.bf16 %v854, %v853
        %v914 = vpack.c.bf16 %v856, %v855
        %v915 = vpack.c.bf16 %v858, %v857
        %v916 = vpack.c.bf16 %v860, %v859
        %v917 = vpack.c.bf16 %v862, %v861
        %v918 = vpack.c.bf16 %v864, %v863
        %v919 = vpack.c.bf16 %v866, %v865
        %v920 = vpack.c.bf16 %v868, %v867
        %v921 = vpack.c.bf16 %v870, %v869
        %v922 = vpack.c.bf16 %v872, %v871
        %v923 = vpack.c.bf16 %v874, %v873
        %v924 = vpack.c.bf16 %v876, %v875
        %v925 = vld [vmem:[%s4] sm:$0xff]
        %v926 = vld [vmem:[%s4 + $0x8] sm:$0xff]
        %v927 = vld [vmem:[%s4 + $0x10] sm:$0xff]
        %v928 = vld [vmem:[%s4 + $0x18] sm:$0xff]
        %v929 = vld [vmem:[%s4 + $0x20] sm:$0xff]
        %v930 = vld [vmem:[%s4 + $0x28] sm:$0xff]
        %v931 = vld [vmem:[%s4 + $0x30] sm:$0xff]
        %v932 = vld [vmem:[%s4 + $0x38] sm:$0xff]
        %v933 = vld [vmem:[%s4 + $0x40] sm:$0xff]
        %v934 = vld [vmem:[%s4 + $0x48] sm:$0xff]
        %v935 = vld [vmem:[%s4 + $0x50] sm:$0xff]
        %v936 = vld [vmem:[%s4 + $0x58] sm:$0xff]
        %v937 = vld [vmem:[%s4 + $0x60] sm:$0xff]
        %v938 = vld [vmem:[%s4 + $0x68] sm:$0xff]
        %v939 = vld [vmem:[%s4 + $0x70] sm:$0xff]
        %v940 = vld [vmem:[%s4 + $0x78] sm:$0xff]
        %v941 = vld [vmem:[%s4 + $0x80] sm:$0xff]
        %v942 = vld [vmem:[%s4 + $0x88] sm:$0xff]
        %v943 = vld [vmem:[%s4 + $0x90] sm:$0xff]
        %v944 = vld [vmem:[%s4 + $0x98] sm:$0xff]
        %v945 = vld [vmem:[%s4 + $0xa0] sm:$0xff]
        %v946 = vld [vmem:[%s4 + $0xa8] sm:$0xff]
        %v947 = vld [vmem:[%s4 + $0xb0] sm:$0xff]
        %v948 = vld [vmem:[%s4 + $0xb8] sm:$0xff]
        %v949 = vld [vmem:[%s4 + $0xc0] sm:$0xff]
        %v950 = vld [vmem:[%s4 + $0xc8] sm:$0xff]
        %v951 = vld [vmem:[%s4 + $0xd0] sm:$0xff]
        %v952 = vld [vmem:[%s4 + $0xd8] sm:$0xff]
        %v953 = vld [vmem:[%s4 + $0xe0] sm:$0xff]
        %v954 = vld [vmem:[%s4 + $0xe8] sm:$0xff]
        %v955 = vld [vmem:[%s4 + $0xf0] sm:$0xff]
        %v956 = vld [vmem:[%s4 + $0xf8] sm:$0xff]
        %958 = vset.pattern.permute.xlu0 0
        %959 = vperm.xlu0 %958, %v925
        %v960 = vpop.permute.xlu0 %959
        %963 = vset.pattern.permute.xlu0 0
        %964 = vperm.xlu0 %963, %v926
        %v965 = vpop.permute.xlu0 %964
        %968 = vset.pattern.permute.xlu0 0
        %969 = vperm.xlu0 %968, %v927
        %v970 = vpop.permute.xlu0 %969
        %973 = vset.pattern.permute.xlu0 0
        %974 = vperm.xlu0 %973, %v928
        %v975 = vpop.permute.xlu0 %974
        %978 = vset.pattern.permute.xlu0 0
        %979 = vperm.xlu0 %978, %v929
        %v980 = vpop.permute.xlu0 %979
        %983 = vset.pattern.permute.xlu0 0
        %984 = vperm.xlu0 %983, %v930
        %v985 = vpop.permute.xlu0 %984
        %988 = vset.pattern.permute.xlu0 0
        %989 = vperm.xlu0 %988, %v931
        %v990 = vpop.permute.xlu0 %989
        %993 = vset.pattern.permute.xlu0 0
        %994 = vperm.xlu0 %993, %v932
        %v995 = vpop.permute.xlu0 %994
        %998 = vset.pattern.permute.xlu0 0
        %999 = vperm.xlu0 %998, %v933
        %v1000 = vpop.permute.xlu0 %999
        %1003 = vset.pattern.permute.xlu0 0
        %1004 = vperm.xlu0 %1003, %v934
        %v1005 = vpop.permute.xlu0 %1004
        %1008 = vset.pattern.permute.xlu0 0
        %1009 = vperm.xlu0 %1008, %v935
        %v1010 = vpop.permute.xlu0 %1009
        %1013 = vset.pattern.permute.xlu0 0
        %1014 = vperm.xlu0 %1013, %v936
        %v1015 = vpop.permute.xlu0 %1014
        %1018 = vset.pattern.permute.xlu0 0
        %1019 = vperm.xlu0 %1018, %v937
        %v1020 = vpop.permute.xlu0 %1019
        %1023 = vset.pattern.permute.xlu0 0
        %1024 = vperm.xlu0 %1023, %v938
        %v1025 = vpop.permute.xlu0 %1024
        %1028 = vset.pattern.permute.xlu0 0
        %1029 = vperm.xlu0 %1028, %v939
        %v1030 = vpop.permute.xlu0 %1029
        %1033 = vset.pattern.permute.xlu0 0
        %1034 = vperm.xlu0 %1033, %v940
        %v1035 = vpop.permute.xlu0 %1034
        %1038 = vset.pattern.permute.xlu0 0
        %1039 = vperm.xlu0 %1038, %v941
        %v1040 = vpop.permute.xlu0 %1039
        %1043 = vset.pattern.permute.xlu0 0
        %1044 = vperm.xlu0 %1043, %v942
        %v1045 = vpop.permute.xlu0 %1044
        %1048 = vset.pattern.permute.xlu0 0
        %1049 = vperm.xlu0 %1048, %v943
        %v1050 = vpop.permute.xlu0 %1049
        %1053 = vset.pattern.permute.xlu0 0
        %1054 = vperm.xlu0 %1053, %v944
        %v1055 = vpop.permute.xlu0 %1054
        %1058 = vset.pattern.permute.xlu0 0
        %1059 = vperm.xlu0 %1058, %v945
        %v1060 = vpop.permute.xlu0 %1059
        %1063 = vset.pattern.permute.xlu0 0
        %1064 = vperm.xlu0 %1063, %v946
        %v1065 = vpop.permute.xlu0 %1064
        %1068 = vset.pattern.permute.xlu0 0
        %1069 = vperm.xlu0 %1068, %v947
        %v1070 = vpop.permute.xlu0 %1069
        %1073 = vset.pattern.permute.xlu0 0
        %1074 = vperm.xlu0 %1073, %v948
        %v1075 = vpop.permute.xlu0 %1074
        %1078 = vset.pattern.permute.xlu0 0
        %1079 = vperm.xlu0 %1078, %v949
        %v1080 = vpop.permute.xlu0 %1079
        %1083 = vset.pattern.permute.xlu0 0
        %1084 = vperm.xlu0 %1083, %v950
        %v1085 = vpop.permute.xlu0 %1084
        %1088 = vset.pattern.permute.xlu0 0
        %1089 = vperm.xlu0 %1088, %v951
        %v1090 = vpop.permute.xlu0 %1089
        %1093 = vset.pattern.permute.xlu0 0
        %1094 = vperm.xlu0 %1093, %v952
        %v1095 = vpop.permute.xlu0 %1094
        %1098 = vset.pattern.permute.xlu0 0
        %1099 = vperm.xlu0 %1098, %v953
        %v1100 = vpop.permute.xlu0 %1099
        %1103 = vset.pattern.permute.xlu0 0
        %1104 = vperm.xlu0 %1103, %v954
        %v1105 = vpop.permute.xlu0 %1104
        %1108 = vset.pattern.permute.xlu0 0
        %1109 = vperm.xlu0 %1108, %v955
        %v1110 = vpop.permute.xlu0 %1109
        %1113 = vset.pattern.permute.xlu0 0
        %1114 = vperm.xlu0 %1113, %v956
        %v1115 = vpop.permute.xlu0 %1114
        %v1149 = vunpack.c.l.b16 %v877
        %v1150 = vunpack.c.h.b16 %v877
        %v1151 = vunpack.c.l.b16 %v878
        %v1152 = vunpack.c.h.b16 %v878
        %v1153 = vunpack.c.l.b16 %v879
        %v1154 = vunpack.c.h.b16 %v879
        %v1155 = vunpack.c.l.b16 %v880
        %v1156 = vunpack.c.h.b16 %v880
        %v1157 = vunpack.c.l.b16 %v881
        %v1158 = vunpack.c.h.b16 %v881
        %v1159 = vunpack.c.l.b16 %v882
        %v1160 = vunpack.c.h.b16 %v882
        %v1161 = vunpack.c.l.b16 %v883
        %v1162 = vunpack.c.h.b16 %v883
        %v1163 = vunpack.c.l.b16 %v884
        %v1164 = vunpack.c.h.b16 %v884
        %v1165 = vunpack.c.l.b16 %v885
        %v1166 = vunpack.c.h.b16 %v885
        %v1167 = vunpack.c.l.b16 %v886
        %v1168 = vunpack.c.h.b16 %v886
        %v1169 = vunpack.c.l.b16 %v887
        %v1170 = vunpack.c.h.b16 %v887
        %v1171 = vunpack.c.l.b16 %v888
        %v1172 = vunpack.c.h.b16 %v888
        %v1173 = vunpack.c.l.b16 %v889
        %v1174 = vunpack.c.h.b16 %v889
        %v1175 = vunpack.c.l.b16 %v890
        %v1176 = vunpack.c.h.b16 %v890
        %v1177 = vunpack.c.l.b16 %v891
        %v1178 = vunpack.c.h.b16 %v891
        %v1179 = vunpack.c.l.b16 %v892
        %v1180 = vunpack.c.h.b16 %v892
        %v1181 = vunpack.c.l.b16 %v893
        %v1182 = vunpack.c.h.b16 %v893
        %v1183 = vunpack.c.l.b16 %v894
        %v1184 = vunpack.c.h.b16 %v894
        %v1185 = vunpack.c.l.b16 %v895
        %v1186 = vunpack.c.h.b16 %v895
        %v1187 = vunpack.c.l.b16 %v896
        %v1188 = vunpack.c.h.b16 %v896
        %v1189 = vunpack.c.l.b16 %v897
        %v1190 = vunpack.c.h.b16 %v897
        %v1191 = vunpack.c.l.b16 %v898
        %v1192 = vunpack.c.h.b16 %v898
        %v1193 = vunpack.c.l.b16 %v899
        %v1194 = vunpack.c.h.b16 %v899
        %v1195 = vunpack.c.l.b16 %v900
        %v1196 = vunpack.c.h.b16 %v900
        %v1197 = vunpack.c.l.b16 %v901
        %v1198 = vunpack.c.h.b16 %v901
        %v1199 = vunpack.c.l.b16 %v902
        %v1200 = vunpack.c.h.b16 %v902
        %v1201 = vunpack.c.l.b16 %v903
        %v1202 = vunpack.c.h.b16 %v903
        %v1203 = vunpack.c.l.b16 %v904
        %v1204 = vunpack.c.h.b16 %v904
        %v1205 = vunpack.c.l.b16 %v905
        %v1206 = vunpack.c.h.b16 %v905
        %v1207 = vunpack.c.l.b16 %v906
        %v1208 = vunpack.c.h.b16 %v906
        %v1209 = vunpack.c.l.b16 %v907
        %v1210 = vunpack.c.h.b16 %v907
        %v1211 = vunpack.c.l.b16 %v908
        %v1212 = vunpack.c.h.b16 %v908
        %v1213 = vpack.c.b16 %v1151, %v1149
        %v1214 = vpack.c.b16 %v1152, %v1150
        %v1215 = vpack.c.b16 %v1155, %v1153
        %v1216 = vpack.c.b16 %v1156, %v1154
        %v1217 = vpack.c.b16 %v1159, %v1157
        %v1218 = vpack.c.b16 %v1160, %v1158
        %v1219 = vpack.c.b16 %v1163, %v1161
        %v1220 = vpack.c.b16 %v1164, %v1162
        %v1221 = vpack.c.b16 %v1167, %v1165
        %v1222 = vpack.c.b16 %v1168, %v1166
        %v1223 = vpack.c.b16 %v1171, %v1169
        %v1224 = vpack.c.b16 %v1172, %v1170
        %v1225 = vpack.c.b16 %v1175, %v1173
        %v1226 = vpack.c.b16 %v1176, %v1174
        %v1227 = vpack.c.b16 %v1179, %v1177
        %v1228 = vpack.c.b16 %v1180, %v1178
        %v1229 = vpack.c.b16 %v1183, %v1181
        %v1230 = vpack.c.b16 %v1184, %v1182
        %v1231 = vpack.c.b16 %v1187, %v1185
        %v1232 = vpack.c.b16 %v1188, %v1186
        %v1233 = vpack.c.b16 %v1191, %v1189
        %v1234 = vpack.c.b16 %v1192, %v1190
        %v1235 = vpack.c.b16 %v1195, %v1193
        %v1236 = vpack.c.b16 %v1196, %v1194
        %v1237 = vpack.c.b16 %v1199, %v1197
        %v1238 = vpack.c.b16 %v1200, %v1198
        %v1239 = vpack.c.b16 %v1203, %v1201
        %v1240 = vpack.c.b16 %v1204, %v1202
        %v1241 = vpack.c.b16 %v1207, %v1205
        %v1242 = vpack.c.b16 %v1208, %v1206
        %v1243 = vpack.c.b16 %v1211, %v1209
        %v1244 = vpack.c.b16 %v1212, %v1210
        %1277 = vmatprep.subr.bf16.mxu0 0
        %1278 = vmatpush1.bf16.msra.mxu0 %v909
        %1279 = vmatprep.subr.bf16.mxu0 0
        %1280 = vmatpush1.bf16.msra.mxu0 %v910
        %1281 = vmatprep.subr.bf16.mxu0 0
        %1282 = vmatpush1.bf16.msra.mxu0 %v911
        %1283 = vmatprep.subr.bf16.mxu0 0
        %1284 = vmatpush1.bf16.msra.mxu0 %v912
        %1285 = vmatprep.subr.bf16.mxu0 0
        %1286 = vmatpush1.bf16.msra.mxu0 %v913
        %1287 = vmatprep.subr.bf16.mxu0 0
        %1288 = vmatpush1.bf16.msra.mxu0 %v914
        %1289 = vmatprep.subr.bf16.mxu0 0
        %1290 = vmatpush1.bf16.msra.mxu0 %v915
        %1291 = vmatprep.subr.bf16.mxu0 0
        %1292 = vmatpush1.bf16.msra.mxu0 %v916
        %1293 = vmatprep.subr.bf16.mxu0 0
        %1294 = vmatpush1.bf16.msra.mxu0 %v917
        %1295 = vmatprep.subr.bf16.mxu0 0
        %1296 = vmatpush1.bf16.msra.mxu0 %v918
        %1297 = vmatprep.subr.bf16.mxu0 0
        %1298 = vmatpush1.bf16.msra.mxu0 %v919
        %1299 = vmatprep.subr.bf16.mxu0 0
        %1300 = vmatpush1.bf16.msra.mxu0 %v920
        %1301 = vmatprep.subr.bf16.mxu0 0
        %1302 = vmatpush1.bf16.msra.mxu0 %v921
        %1303 = vmatprep.subr.bf16.mxu0 0
        %1304 = vmatpush1.bf16.msra.mxu0 %v922
        %1305 = vmatprep.subr.bf16.mxu0 0
        %1306 = vmatpush1.bf16.msra.mxu0 %v923
        %1307 = vmatprep.subr.bf16.mxu0 0
        %1308 = vmatpush1.bf16.msra.mxu0 %v924
        %1309 = vmatprep.mubr.bf16.mxu0 %v1214
        %1310 = vmatmul.mubr.bf16.gmra.mrb[0].mxu0 %v1213
        %v1311 = vpop.f32.mrb[0].mxu0
        %v1312 = vadd.f32 %v960, %v1311
        %v1313 = vpop.f32.mrb[0].mxu0
        %v1314 = vpop.f32.mrb[0].mxu0
        %v1315 = vadd.f32 %v965, %v1314
        %v1316 = vpop.f32.mrb[0].mxu0
        %1317 = vmatprep.mubr.bf16.mxu0 %v1216
        %1318 = vmatmul.mubr.bf16.gmra.mrb[0].mxu0 %v1215
        %v1319 = vpop.f32.mrb[0].mxu0
        %v1320 = vadd.f32 %v970, %v1319
        %v1321 = vpop.f32.mrb[0].mxu0
        %v1322 = vpop.f32.mrb[0].mxu0
        %v1323 = vadd.f32 %v975, %v1322
        %v1324 = vpop.f32.mrb[0].mxu0
        %1325 = vmatprep.mubr.bf16.mxu0 %v1218
        %1326 = vmatmul.mubr.bf16.gmra.mrb[0].mxu0 %v1217
        %v1327 = vpop.f32.mrb[0].mxu0
        %v1328 = vadd.f32 %v980, %v1327
        %v1329 = vpop.f32.mrb[0].mxu0
        %v1330 = vpop.f32.mrb[0].mxu0
        %v1331 = vadd.f32 %v985, %v1330
        %v1332 = vpop.f32.mrb[0].mxu0
        %1333 = vmatprep.mubr.bf16.mxu0 %v1220
        %1334 = vmatmul.mubr.bf16.gmra.mrb[0].mxu0 %v1219
        %v1335 = vpop.f32.mrb[0].mxu0
        %v1336 = vadd.f32 %v990, %v1335
        %v1337 = vpop.f32.mrb[0].mxu0
        %v1338 = vpop.f32.mrb[0].mxu0
        %v1339 = vadd.f32 %v995, %v1338
        %v1340 = vpop.f32.mrb[0].mxu0
        %1341 = vmatprep.mubr.bf16.mxu0 %v1222
        %1342 = vmatmul.mubr.bf16.gmra.mrb[0].mxu0 %v1221
        %v1343 = vpop.f32.mrb[0].mxu0
        %v1344 = vadd.f32 %v1000, %v1343
        %v1345 = vpop.f32.mrb[0].mxu0
        %v1346 = vpop.f32.mrb[0].mxu0
        %v1347 = vadd.f32 %v1005, %v1346
        %v1348 = vpop.f32.mrb[0].mxu0
        %1349 = vmatprep.mubr.bf16.mxu0 %v1224
        %1350 = vmatmul.mubr.bf16.gmra.mrb[0].mxu0 %v1223
        %v1351 = vpop.f32.mrb[0].mxu0
        %v1352 = vadd.f32 %v1010, %v1351
        %v1353 = vpop.f32.mrb[0].mxu0
        %v1354 = vpop.f32.mrb[0].mxu0
        %v1355 = vadd.f32 %v1015, %v1354
        %v1356 = vpop.f32.mrb[0].mxu0
        %1357 = vmatprep.mubr.bf16.mxu0 %v1226
        %1358 = vmatmul.mubr.bf16.gmra.mrb[0].mxu0 %v1225
        %v1359 = vpop.f32.mrb[0].mxu0
        %v1360 = vadd.f32 %v1020, %v1359
        %v1361 = vpop.f32.mrb[0].mxu0
        %v1362 = vpop.f32.mrb[0].mxu0
        %v1363 = vadd.f32 %v1025, %v1362
        %v1364 = vpop.f32.mrb[0].mxu0
        %1365 = vmatprep.mubr.bf16.mxu0 %v1228
        %1366 = vmatmul.mubr.bf16.gmra.mrb[0].mxu0 %v1227
        %v1367 = vpop.f32.mrb[0].mxu0
        %v1368 = vadd.f32 %v1030, %v1367
        %v1369 = vpop.f32.mrb[0].mxu0
        %v1370 = vpop.f32.mrb[0].mxu0
        %v1371 = vadd.f32 %v1035, %v1370
        %v1372 = vpop.f32.mrb[0].mxu0
        %1373 = vmatprep.mubr.bf16.mxu0 %v1230
        %1374 = vmatmul.mubr.bf16.gmra.mrb[0].mxu0 %v1229
        %v1375 = vpop.f32.mrb[0].mxu0
        %v1376 = vadd.f32 %v1040, %v1375
        %v1377 = vpop.f32.mrb[0].mxu0
        %v1378 = vpop.f32.mrb[0].mxu0
        %v1379 = vadd.f32 %v1045, %v1378
        %v1380 = vpop.f32.mrb[0].mxu0
        %1381 = vmatprep.mubr.bf16.mxu0 %v1232
        %1382 = vmatmul.mubr.bf16.gmra.mrb[0].mxu0 %v1231
        %v1383 = vpop.f32.mrb[0].mxu0
        %v1384 = vadd.f32 %v1050, %v1383
        %v1385 = vpop.f32.mrb[0].mxu0
        %v1386 = vpop.f32.mrb[0].mxu0
        %v1387 = vadd.f32 %v1055, %v1386
        %v1388 = vpop.f32.mrb[0].mxu0
        %1389 = vmatprep.mubr.bf16.mxu0 %v1234
        %1390 = vmatmul.mubr.bf16.gmra.mrb[0].mxu0 %v1233
        %v1391 = vpop.f32.mrb[0].mxu0
        %v1392 = vadd.f32 %v1060, %v1391
        %v1393 = vpop.f32.mrb[0].mxu0
        %v1394 = vpop.f32.mrb[0].mxu0
        %v1395 = vadd.f32 %v1065, %v1394
        %v1396 = vpop.f32.mrb[0].mxu0
        %1397 = vmatprep.mubr.bf16.mxu0 %v1236
        %1398 = vmatmul.mubr.bf16.gmra.mrb[0].mxu0 %v1235
        %v1399 = vpop.f32.mrb[0].mxu0
        %v1400 = vadd.f32 %v1070, %v1399
        %v1401 = vpop.f32.mrb[0].mxu0
        %v1402 = vpop.f32.mrb[0].mxu0
        %v1403 = vadd.f32 %v1075, %v1402
        %v1404 = vpop.f32.mrb[0].mxu0
        %1405 = vmatprep.mubr.bf16.mxu0 %v1238
        %1406 = vmatmul.mubr.bf16.gmra.mrb[0].mxu0 %v1237
        %v1407 = vpop.f32.mrb[0].mxu0
        %v1408 = vadd.f32 %v1080, %v1407
        %v1409 = vpop.f32.mrb[0].mxu0
        %v1410 = vpop.f32.mrb[0].mxu0
        %v1411 = vadd.f32 %v1085, %v1410
        %v1412 = vpop.f32.mrb[0].mxu0
        %1413 = vmatprep.mubr.bf16.mxu0 %v1240
        %1414 = vmatmul.mubr.bf16.gmra.mrb[0].mxu0 %v1239
        %v1415 = vpop.f32.mrb[0].mxu0
        %v1416 = vadd.f32 %v1090, %v1415
        %v1417 = vpop.f32.mrb[0].mxu0
        %v1418 = vpop.f32.mrb[0].mxu0
        %v1419 = vadd.f32 %v1095, %v1418
        %v1420 = vpop.f32.mrb[0].mxu0
        %1421 = vmatprep.mubr.bf16.mxu0 %v1242
        %1422 = vmatmul.mubr.bf16.gmra.mrb[0].mxu0 %v1241
        %v1423 = vpop.f32.mrb[0].mxu0
        %v1424 = vadd.f32 %v1100, %v1423
        %v1425 = vpop.f32.mrb[0].mxu0
        %v1426 = vpop.f32.mrb[0].mxu0
        %v1427 = vadd.f32 %v1105, %v1426
        %v1428 = vpop.f32.mrb[0].mxu0
        %1429 = vmatprep.mubr.bf16.mxu0 %v1244
        %1430 = vmatmul.mubr.bf16.gmra.mrb[0].mxu0 %v1243
        %v1431 = vpop.f32.mrb[0].mxu0
        %v1432 = vadd.f32 %v1110, %v1431
        %v1433 = vpop.f32.mrb[0].mxu0
        %v1434 = vpop.f32.mrb[0].mxu0
        %v1435 = vadd.f32 %v1115, %v1434
        %v1436 = vpop.f32.mrb[0].mxu0
        %1437 = vdwg.mxu0
        %v1438 = vmax.f32 %v1312, 0.0
        %v1439 = vmax.f32 %v1315, 0.0
        %v1440 = vmax.f32 %v1320, 0.0
        %v1441 = vmax.f32 %v1323, 0.0
        %v1442 = vmax.f32 %v1328, 0.0
        %v1443 = vmax.f32 %v1331, 0.0
        %v1444 = vmax.f32 %v1336, 0.0
        %v1445 = vmax.f32 %v1339, 0.0
        %v1446 = vmax.f32 %v1344, 0.0
        %v1447 = vmax.f32 %v1347, 0.0
        %v1448 = vmax.f32 %v1352, 0.0
        %v1449 = vmax.f32 %v1355, 0.0
        %v1450 = vmax.f32 %v1360, 0.0
        %v1451 = vmax.f32 %v1363, 0.0
        %v1452 = vmax.f32 %v1368, 0.0
        %v1453 = vmax.f32 %v1371, 0.0
        %v1454 = vmax.f32 %v1376, 0.0
        %v1455 = vmax.f32 %v1379, 0.0
        %v1456 = vmax.f32 %v1384, 0.0
        %v1457 = vmax.f32 %v1387, 0.0
        %v1458 = vmax.f32 %v1392, 0.0
        %v1459 = vmax.f32 %v1395, 0.0
        %v1460 = vmax.f32 %v1400, 0.0
        %v1461 = vmax.f32 %v1403, 0.0
        %v1462 = vmax.f32 %v1408, 0.0
        %v1463 = vmax.f32 %v1411, 0.0
        %v1464 = vmax.f32 %v1416, 0.0
        %v1465 = vmax.f32 %v1419, 0.0
        %v1466 = vmax.f32 %v1424, 0.0
        %v1467 = vmax.f32 %v1427, 0.0
        %v1468 = vmax.f32 %v1432, 0.0
        %v1469 = vmax.f32 %v1435, 0.0
        %v1470 = vld [vmem:[%s5] sm:$0x3]
        %v1471 = vpack.c.bf16 %v1439, %v1438
        %v1472 = vpack.c.bf16 %v1441, %v1440
        %v1473 = vpack.c.bf16 %v1443, %v1442
        %v1474 = vpack.c.bf16 %v1445, %v1444
        %v1475 = vpack.c.bf16 %v1447, %v1446
        %v1476 = vpack.c.bf16 %v1449, %v1448
        %v1477 = vpack.c.bf16 %v1451, %v1450
        %v1478 = vpack.c.bf16 %v1453, %v1452
        %v1479 = vpack.c.bf16 %v1455, %v1454
        %v1480 = vpack.c.bf16 %v1457, %v1456
        %v1481 = vpack.c.bf16 %v1459, %v1458
        %v1482 = vpack.c.bf16 %v1461, %v1460
        %v1483 = vpack.c.bf16 %v1463, %v1462
        %v1484 = vpack.c.bf16 %v1465, %v1464
        %v1485 = vpack.c.bf16 %v1467, %v1466
        %v1486 = vpack.c.bf16 %v1469, %v1468
        %s1487 = sld [smem:[#allocation2]]
        %v1488 = vstv %s1487
        %v1491 = vunpack.c.l.s4 1966171168
        %v1492 = vunpack.c.0.s8 %v1491
        %v1493 = vlaneseq
        %v1494 = vshrl.u32 %v1493, 7
        %v1495 = vsub.s32 %v1492, %v1494
        %v1496 = vrot.slane %v1470, %v1495
        %v1497 = vcombine.high %v1496, %v1496
        %v1499 = vunpack.c.l.s4 1966171168
        %v1500 = vunpack.c.0.s8 %v1499
        %v1501 = vlaneseq
        %v1502 = vshrl.u32 %v1501, 7
        %v1503 = vsub.s32 %v1500, %v1502
        %v1504 = vrot.slane %v1496, %v1503
        %v1506 = vunpack.c.l.s4 1966171168
        %v1507 = vunpack.c.0.s8 %v1506
        %v1508 = vlaneseq
        %v1509 = vshrl.u32 %v1508, 7
        %v1510 = vsub.s32 %v1507, %v1509
        %v1511 = vrot.slane %v1497, %v1510
        %1514 = vmatprep.subr.bf16.mxu0 0
        %1515 = vmatpush1.bf16.msra.mxu0 %v1471
        %1516 = vmatprep.subr.bf16.mxu0 0
        %1517 = vmatpush1.bf16.msra.mxu0 %v1472
        %1518 = vmatprep.subr.bf16.mxu0 0
        %1519 = vmatpush1.bf16.msra.mxu0 %v1473
        %1520 = vmatprep.subr.bf16.mxu0 0
        %1521 = vmatpush1.bf16.msra.mxu0 %v1474
        %1522 = vmatprep.subr.bf16.mxu0 0
        %1523 = vmatpush1.bf16.msra.mxu0 %v1475
        %1524 = vmatprep.subr.bf16.mxu0 0
        %1525 = vmatpush1.bf16.msra.mxu0 %v1476
        %1526 = vmatprep.subr.bf16.mxu0 0
        %1527 = vmatpush1.bf16.msra.mxu0 %v1477
        %1528 = vmatprep.subr.bf16.mxu0 0
        %1529 = vmatpush1.bf16.msra.mxu0 %v1478
        %1530 = vmatprep.subr.bf16.mxu0 0
        %1531 = vmatpush1.bf16.msra.mxu0 %v1479
        %1532 = vmatprep.subr.bf16.mxu0 0
        %1533 = vmatpush1.bf16.msra.mxu0 %v1480
        %1534 = vmatprep.subr.bf16.mxu0 0
        %1535 = vmatpush1.bf16.msra.mxu0 %v1481
        %1536 = vmatprep.subr.bf16.mxu0 0
        %1537 = vmatpush1.bf16.msra.mxu0 %v1482
        %1538 = vmatprep.subr.bf16.mxu0 0
        %1539 = vmatpush1.bf16.msra.mxu0 %v1483
        %1540 = vmatprep.subr.bf16.mxu0 0
        %1541 = vmatpush1.bf16.msra.mxu0 %v1484
        %1542 = vmatprep.subr.bf16.mxu0 0
        %1543 = vmatpush1.bf16.msra.mxu0 %v1485
        %1544 = vmatprep.subr.bf16.mxu0 0
        %1545 = vmatpush1.bf16.msra.mxu0 %v1486
        %1546 = vmatprep.mubr.bf16.mxu0 %v1511
        %1547 = vmatmul.mubr.bf16.gmra.mrb[0].mxu0 %v1504
        %v1548 = vpop.f32.mrb[0].mxu0
        %v1549 = vadd.f32 %v1488, %v1548
        %v1550 = vpop.f32.mrb[0].mxu0
        %v1551 = vpop.f32.mrb[0].mxu0
        %v1552 = vpop.f32.mrb[0].mxu0
        %1553 = vdwg.mxu0
        %1554 = vst [vmem:[%s321] sm:$0x1] %v1549
        %s1555 = sand.u32 %s182, 1
        %s1556 = scalar_lea.sflag [#allocation5], %s1555
        %s1557 = sand.u32 %s182, 1
        %s1558 = scalar_lea.vmem [#allocation4], %s1557
        // Predicated region
        $region90: #{tpu_custom_call.1} parent=84 // pred_check
          %p1559 = pneg %p192
        $region91: #{tpu_custom_call.1} parent=84 // pred_check_branch
          %1561 = sbr.rel (%p1559) target = $region93
        $region92: #{tpu_custom_call.1} parent=84 // pred_region
          %s1563 = ssub.s32 16, 16
          %1564 = vsyncadd %s1556, %s1563
          %s1565 = smul.addr %s22, 16
          %s1566 = scalar_lea.hbm %s7, %s1565
          %s1568 = sshll.u32 %s1558, 4
          %s1569 = int_to_ptr.vmem [resolvable:$true] %s1568
          %1571 = dma.vmem_to_hbm [thread:$0]  %s1569, 16, %s1566, %s1556
        $region93: #{tpu_custom_call.1} parent=84 // pred_fallthru
          _
      $region85: #{tpu_custom_call.1} parent=5 // pred_fallthru
        _
      %p1572 = scmp.le.s32.totalorder 2, %s17
      // Predicated region
      $region94: #{tpu_custom_call.1} parent=5 // pred_check
        %p1573 = pneg %p1572
      $region95: #{tpu_custom_call.1} parent=5 // pred_check_branch
        %1575 = sbr.rel (%p1573) target = $region97
      $region96: #{tpu_custom_call.1} parent=5 // pred_region
        %s1576 = ssub.s32 %s17, 2
        // Predicated region
        $region98: #{tpu_custom_call.1} parent=96 // pred_check
          %p1577 = pneg %p198
        $region99: #{tpu_custom_call.1} parent=96 // pred_check_branch
          %1579 = sbr.rel (%p1577) target = $region101
        $region100: #{tpu_custom_call.1} parent=96 // pred_region
          %s1580 = sand.u32 %s183, 1
          %s1581 = scalar_lea.sflag [#allocation5], %s1580
          %s1582 = sand.u32 %s183, 1
          %s1583 = scalar_lea.vmem [#allocation4], %s1582
          %1584 = dma.done %s1581, 16
        $region101: #{tpu_custom_call.1} parent=96 // pred_fallthru
          _
      $region97: #{tpu_custom_call.1} parent=5 // pred_fallthru
        _
    $region6: #{tpu_custom_call.1} parent=1 // loop_footer
      %s21 = sadd.s32 1, %s17
    $region7: #{tpu_custom_call.1} parent=1 // loop_footer_branch
      %16 = sbr.rel target = $region3
    $region8: #{tpu_custom_call.1} parent=1 // loop_exit
      _
    %1585 = vsyncpa [#allocation5], 1
    %s1586 = scalar_lea.sflag [#allocation5], 1
    %1587 = vsyncpa %s1586, 1

</llo_original>
